<compile_context>
chip_gen: v6e
topology: v6e:2x2x1
jax: 0.10.0
libtpu: 0.0.40
codegen_flags: <defaults>
</compile_context>

<pallas_src>
import jax
import jax.numpy as jnp
from jax.experimental import pallas as pl
from jax.experimental.pallas import tpu as pltpu

EPS = 1e-5


def _conv1x1_bn_kernel(x_ref, w_ref, gamma_ref, beta_ref, o_ref):
    # x_ref:     [N, Cin, HW]   bf16
    # w_ref:     [Ct, Cin]      bf16   (Ct = Cout tile)
    # gamma_ref: [Ct, 1]        f32
    # beta_ref:  [Ct, 1]        f32
    # o_ref:     [N, Ct, HW]    f32
    n_batch = x_ref.shape[0]
    hw = x_ref.shape[2]
    count = n_batch * hw

    w = w_ref[...]

    # Per-image GEMM on the MXU, f32 accumulation; accumulate per-channel sums.
    ys = []
    total = jnp.zeros((w.shape[0], 1), jnp.float32)
    for n in range(n_batch):
        y = jnp.dot(w, x_ref[n], preferred_element_type=jnp.float32)  # [Ct, HW]
        ys.append(y)
        total = total + jnp.sum(y, axis=1, keepdims=True)
    mean = total / count                                              # [Ct, 1]

    # Centered (numerically safe) biased variance, stats kept in f32.
    var_sum = jnp.zeros_like(total)
    for y in ys:
        c = y - mean
        var_sum = var_sum + jnp.sum(c * c, axis=1, keepdims=True)
    var = var_sum / count                                             # [Ct, 1]

    # Fold BN into a single per-channel affine.
    inv_std = jax.lax.rsqrt(var + EPS)
    scale = gamma_ref[...] * inv_std                                  # [Ct, 1]
    shift = beta_ref[...] - mean * scale                              # [Ct, 1]

    for n in range(n_batch):
        o_ref[n] = (ys[n] * scale + shift).astype(o_ref.dtype)


def conv1x1_batchnorm(x_nchw, conv_weight, bn_gamma, bn_beta, *, cout_tile=128):
    """x_nchw: [N, 64, H, W]; conv_weight: [384, 64, 1, 1]; gamma/beta: [384]."""
    N, Cin, H, W = x_nchw.shape
    Cout = conv_weight.shape[0]
    HW = H * W
    assert Cout % cout_tile == 0, (Cout, cout_tile)
    n_tiles = Cout // cout_tile

    # Contiguous reshapes only — no layout transposes.
    x = x_nchw.reshape(N, Cin, HW).astype(jnp.bfloat16)
    w = conv_weight.reshape(Cout, Cin).astype(jnp.bfloat16)
    gamma = bn_gamma.reshape(Cout, 1).astype(jnp.float32)
    beta = bn_beta.reshape(Cout, 1).astype(jnp.float32)

    flops = 2 * N * HW * Cin * Cout
    bytes_accessed = (
        x.size * 2 + w.size * 2 + gamma.size * 4 + beta.size * 4
        + N * Cout * HW * 4
    )

    out = pl.pallas_call(
        _conv1x1_bn_kernel,
        out_shape=jax.ShapeDtypeStruct((N, Cout, HW), jnp.float32),
        grid=(n_tiles,),
        in_specs=[
            pl.BlockSpec((N, Cin, HW), lambda j: (0, 0, 0)),
            pl.BlockSpec((cout_tile, Cin), lambda j: (j, 0)),
            pl.BlockSpec((cout_tile, 1), lambda j: (j, 0)),
            pl.BlockSpec((cout_tile, 1), lambda j: (j, 0)),
        ],
        out_specs=pl.BlockSpec((N, cout_tile, HW), lambda j: (0, j, 0)),
        compiler_params=pltpu.CompilerParams(
            dimension_semantics=("parallel",),
        ),
        cost_estimate=pl.CostEstimate(
            flops=flops, transcendentals=Cout, bytes_accessed=bytes_accessed
        ),
    )(x, w, gamma, beta)

    # Output is already channel-major: [N, Cout, HW] -> NCHW (free reshape).
    return out.reshape(N, Cout, H, W)


if __name__ == "__main__":
    key = jax.random.PRNGKey(0)
    k_x, k_w, k_g, k_b = jax.random.split(key, 4)

    # Module-implied channels: Cin=64, Cout=384; keep batch/spatial small.
    N, Cin, H, W, Cout = 2, 64, 16, 16, 384

    x = jax.random.normal(k_x, (N, Cin, H, W), dtype=jnp.float32)
    conv_w = jax.random.normal(k_w, (Cout, Cin, 1, 1), dtype=jnp.float32) * 0.05
    bn_gamma = 1.0 + 0.1 * jax.random.normal(k_g, (Cout,), dtype=jnp.float32)
    bn_beta = 0.1 * jax.random.normal(k_b, (Cout,), dtype=jnp.float32)
    # TODO(synk): BatchNorm running_mean/running_var momentum updates are a
    # training-state side effect and do not affect the forward output; omitted.

    out = conv1x1_batchnorm(x, conv_w, bn_gamma, bn_beta)
    jax.block_until_ready(out)

    assert out.shape == (N, Cout, H, W), out.shape
    print("KERNEL_OK")
</pallas_src>

<mosaic_0001>
module attributes {stable_mosaic.version = 11 : i64} {
  func.func @_conv1x1_bn_kernel(%arg0: i32, %arg1: memref<2x64x256xbf16, #tpu.memory_space<vmem>>, %arg2: memref<128x64xbf16, #tpu.memory_space<vmem>>, %arg3: memref<128x1xf32, #tpu.memory_space<vmem>>, %arg4: memref<128x1xf32, #tpu.memory_space<vmem>>, %arg5: memref<2x128x256xf32, #tpu.memory_space<vmem>>) attributes {dimension_semantics = [#tpu.dimension_semantics<parallel>], iteration_bounds = array<i64: 3>, scalar_prefetch = 0 : i64, scratch_operands = 0 : i64, tpu.core_type = #tpu.core_type<tc>, window_params = [{pipeline_mode = #tpu.pipeline_mode<synchronous>, transform_indices = @transform_0, window_bounds = array<i64: 2, 64, 256>}, {transform_indices = @transform_1, window_bounds = array<i64: 128, 64>}, {transform_indices = @transform_2, window_bounds = array<i64: 128, 1>}, {transform_indices = @transform_3, window_bounds = array<i64: 128, 1>}, {transform_indices = @transform_4, window_bounds = array<i64: 2, 128, 256>}]} {
    %c0 = arith.constant 0 : index
    %c0_0 = arith.constant 0 : index
    %0 = vector.load %arg2[%c0, %c0_0] : memref<128x64xbf16, #tpu.memory_space<vmem>>, vector<128x64xbf16>
    %cst = arith.constant 0.000000e+00 : f32
    %1 = vector.broadcast %cst : f32 to vector<128x1xf32>
    %c0_1 = arith.constant 0 : index
    %c0_2 = arith.constant 0 : index
    %c0_3 = arith.constant 0 : index
    %2 = vector.load %arg1[%c0_1, %c0_2, %c0_3] : memref<2x64x256xbf16, #tpu.memory_space<vmem>>, vector<1x64x256xbf16>
    %3 = vector.shape_cast %2 : vector<1x64x256xbf16> to vector<64x256xbf16>
    %cst_4 = arith.constant dense<0.000000e+00> : vector<128x256xf32>
    %4 = tpu.matmul %0, %3, %cst_4 {dimension_numbers = #tpu.dot_dimension_numbers<[1], [0], [0], [1], [0, 0, 1, 1], [], []>} : vector<128x64xbf16>, vector<64x256xbf16>, vector<128x256xf32> -> vector<128x256xf32>
    %cst_5 = arith.constant dense<0.000000e+00> : vector<128xf32>
    %5 = vector.multi_reduction <add>, %4, %cst_5 [1] : vector<128x256xf32> to vector<128xf32>
    %6 = vector.shape_cast %5 : vector<128xf32> to vector<128x1xf32>
    %7 = arith.addf %1, %6 : vector<128x1xf32>
    %c1 = arith.constant 1 : index
    %c0_6 = arith.constant 0 : index
    %c0_7 = arith.constant 0 : index
    %8 = vector.load %arg1[%c1, %c0_6, %c0_7] : memref<2x64x256xbf16, #tpu.memory_space<vmem>>, vector<1x64x256xbf16>
    %9 = vector.shape_cast %8 : vector<1x64x256xbf16> to vector<64x256xbf16>
    %cst_8 = arith.constant dense<0.000000e+00> : vector<128x256xf32>
    %10 = tpu.matmul %0, %9, %cst_8 {dimension_numbers = #tpu.dot_dimension_numbers<[1], [0], [0], [1], [0, 0, 1, 1], [], []>} : vector<128x64xbf16>, vector<64x256xbf16>, vector<128x256xf32> -> vector<128x256xf32>
    %cst_9 = arith.constant dense<0.000000e+00> : vector<128xf32>
    %11 = vector.multi_reduction <add>, %10, %cst_9 [1] : vector<128x256xf32> to vector<128xf32>
    %12 = vector.shape_cast %11 : vector<128xf32> to vector<128x1xf32>
    %13 = arith.addf %7, %12 : vector<128x1xf32>
    %cst_10 = arith.constant 5.120000e+02 : f32
    %14 = vector.broadcast %cst_10 : f32 to vector<128x1xf32>
    %15 = arith.divf %13, %14 : vector<128x1xf32>
    %cst_11 = arith.constant 0.000000e+00 : f32
    %16 = vector.broadcast %cst_11 : f32 to vector<128x1xf32>
    %17 = vector.broadcast %15 : vector<128x1xf32> to vector<128x256xf32>
    %18 = arith.subf %4, %17 : vector<128x256xf32>
    %19 = arith.mulf %18, %18 : vector<128x256xf32>
    %cst_12 = arith.constant dense<0.000000e+00> : vector<128xf32>
    %20 = vector.multi_reduction <add>, %19, %cst_12 [1] : vector<128x256xf32> to vector<128xf32>
    %21 = vector.shape_cast %20 : vector<128xf32> to vector<128x1xf32>
    %22 = arith.addf %16, %21 : vector<128x1xf32>
    %23 = vector.broadcast %15 : vector<128x1xf32> to vector<128x256xf32>
    %24 = arith.subf %10, %23 : vector<128x256xf32>
    %25 = arith.mulf %24, %24 : vector<128x256xf32>
    %cst_13 = arith.constant dense<0.000000e+00> : vector<128xf32>
    %26 = vector.multi_reduction <add>, %25, %cst_13 [1] : vector<128x256xf32> to vector<128xf32>
    %27 = vector.shape_cast %26 : vector<128xf32> to vector<128x1xf32>
    %28 = arith.addf %22, %27 : vector<128x1xf32>
    %cst_14 = arith.constant 5.120000e+02 : f32
    %29 = vector.broadcast %cst_14 : f32 to vector<128x1xf32>
    %30 = arith.divf %28, %29 : vector<128x1xf32>
    %cst_15 = arith.constant 9.99999974E-6 : f32
    %31 = vector.broadcast %cst_15 : f32 to vector<128x1xf32>
    %32 = arith.addf %30, %31 : vector<128x1xf32>
    %33 = math.rsqrt %32 : vector<128x1xf32>
    %c0_16 = arith.constant 0 : index
    %c0_17 = arith.constant 0 : index
    %34 = vector.load %arg3[%c0_16, %c0_17] : memref<128x1xf32, #tpu.memory_space<vmem>>, vector<128x1xf32>
    %35 = arith.mulf %34, %33 : vector<128x1xf32>
    %c0_18 = arith.constant 0 : index
    %c0_19 = arith.constant 0 : index
    %36 = vector.load %arg4[%c0_18, %c0_19] : memref<128x1xf32, #tpu.memory_space<vmem>>, vector<128x1xf32>
    %37 = arith.mulf %15, %35 : vector<128x1xf32>
    %38 = arith.subf %36, %37 : vector<128x1xf32>
    %39 = vector.broadcast %35 : vector<128x1xf32> to vector<128x256xf32>
    %40 = arith.mulf %4, %39 : vector<128x256xf32>
    %41 = vector.broadcast %38 : vector<128x1xf32> to vector<128x256xf32>
    %42 = arith.addf %40, %41 : vector<128x256xf32>
    %c0_20 = arith.constant 0 : index
    %c0_21 = arith.constant 0 : index
    %c0_22 = arith.constant 0 : index
    %43 = vector.load %arg5[%c0_20, %c0_21, %c0_22] : memref<2x128x256xf32, #tpu.memory_space<vmem>>, vector<1x128x256xf32>
    %44 = vector.shape_cast %43 : vector<1x128x256xf32> to vector<128x256xf32>
    %45 = vector.shape_cast %42 : vector<128x256xf32> to vector<1x128x256xf32>
    tpu.vector_store %arg5[%c0_20, %c0_21, %c0_22], %45 {strides = array<i32>} : memref<2x128x256xf32, #tpu.memory_space<vmem>>, vector<1x128x256xf32>,
    %46 = vector.broadcast %35 : vector<128x1xf32> to vector<128x256xf32>
    %47 = arith.mulf %10, %46 : vector<128x256xf32>
    %48 = vector.broadcast %38 : vector<128x1xf32> to vector<128x256xf32>
    %49 = arith.addf %47, %48 : vector<128x256xf32>
    %c1_23 = arith.constant 1 : index
    %c0_24 = arith.constant 0 : index
    %c0_25 = arith.constant 0 : index
    %50 = vector.load %arg5[%c1_23, %c0_24, %c0_25] : memref<2x128x256xf32, #tpu.memory_space<vmem>>, vector<1x128x256xf32>
    %51 = vector.shape_cast %50 : vector<1x128x256xf32> to vector<128x256xf32>
    %52 = vector.shape_cast %49 : vector<128x256xf32> to vector<1x128x256xf32>
    tpu.vector_store %arg5[%c1_23, %c0_24, %c0_25], %52 {strides = array<i32>} : memref<2x128x256xf32, #tpu.memory_space<vmem>>, vector<1x128x256xf32>,
    return
  }
  func.func @transform_0(%arg0: i32) -> (i32, i32, i32) {
    %c0_i32 = arith.constant 0 : i32
    %c0_i32_0 = arith.constant 0 : i32
    %c0_i32_1 = arith.constant 0 : i32
    %c0_i32_2 = arith.constant 0 : i32
    return %c0_i32, %c0_i32_0, %c0_i32_1 : i32, i32, i32
  }
  func.func @transform_1(%arg0: i32) -> (i32, i32) {
    %c0_i32 = arith.constant 0 : i32
    %c0_i32_0 = arith.constant 0 : i32
    return %arg0, %c0_i32 : i32, i32
  }
  func.func @transform_2(%arg0: i32) -> (i32, i32) {
    %c0_i32 = arith.constant 0 : i32
    %c0_i32_0 = arith.constant 0 : i32
    return %arg0, %c0_i32 : i32, i32
  }
  func.func @transform_3(%arg0: i32) -> (i32, i32) {
    %c0_i32 = arith.constant 0 : i32
    %c0_i32_0 = arith.constant 0 : i32
    return %arg0, %c0_i32 : i32, i32
  }
  func.func @transform_4(%arg0: i32) -> (i32, i32, i32) {
    %c0_i32 = arith.constant 0 : i32
    %c0_i32_0 = arith.constant 0 : i32
    %c0_i32_1 = arith.constant 0 : i32
    return %c0_i32, %arg0, %c0_i32_0 : i32, i32, i32
  }
}

</mosaic_0001>

<llo_original>
// kernel: tpu_custom_call.1
$region0: #{tpu_custom_call.1}
  #allocation0 [shape = 'u32[]', space=smem, size = 0x4, offset = 0x4, fixed_abs, tag = 'smem constant byte address 0x4 - core index']
  #allocation1 [shape = 'u32[144,128]{1,0:T(1,128)}', space=vmem, size = 0x12000, scoped, tag = 'internal scratch']
  #allocation4 [shape = 's32[]', space=sflag, size = 0x4, offset = 0, fixed_abs, tag = 'sflag constant byte address 0x0 - dummy sync flag']
  %s0 = inlined_call_operand.vmem [shape: bf16[2,64,256], index: 0, kind: input, shape index: {}]
  %s1 = inlined_call_operand.vmem [shape: bf16[384,64], index: 1, kind: input, shape index: {}]
  %s2 = inlined_call_operand.vmem [shape: f32[384,1], index: 2, kind: input, shape index: {}]
  %s3 = inlined_call_operand.vmem [shape: f32[384,1], index: 3, kind: input, shape index: {}]
  %s4 = inlined_call_operand.hbm [shape: f32[2,384,256], index: 4, kind: output, shape index: {}]
  %s5 = sld [smem:[#allocation0]]
  $region49: #{tpu_custom_call.1} parent=0
    _
  %s7 = ssub.s32 1, %s5
  %s8 = scalar_select 0, %s7, %s5
  $region1: #{tpu_custom_call.1} parent=0
    #allocation2 [shape = 'u8[524288]{0}', space=vmem, size = 0x80000, scoped, tag = 'output window, operand 0']
    #allocation3 [shape = 's32[2]{0}', space=sflag, size = 0x8, scoped, tag = 'scoped memory for tpu_custom_call.1']
    %9 = vsyncpa [#allocation3], 0
    %s10 = scalar_lea.sflag [#allocation3], 1
    %11 = vsyncpa %s10, 0
    loop: start=0, step=1, limit=5
    $region2: #{tpu_custom_call.1} parent=1 // loop_pre_header
      _
    $region3: #{tpu_custom_call.1} parent=1 // loop_header
      %s13 = sphi 0, %s17
      %p14 = scmp.ge.s32.totalorder %s13, 5
      %s21 = sphi 0, %s21
      %s23 = sphi 0, %s21
      %s24 = sphi 0, %s23
      %s38 = sphi 0, %s24
      %s44 = sphi 0, %s46
      %s47 = sphi 0, %s44
      %s48 = sphi 0, %s47
      %s64 = sphi 0, %s48
      %s70 = sphi 0, %s72
      %s73 = sphi 0, %s70
      %s74 = sphi 0, %s73
      %s90 = sphi 0, %s74
      %s96 = sphi 0, %s98
      %s99 = sphi 0, %s96
      %s100 = sphi 0, %s99
      %s116 = sphi 0, %s100
      %s122 = sphi 0, %s124
      %s125 = sphi 0, %s122
      %s126 = sphi 0, %s125
      %s142 = sphi 0, %s126
    $region4: #{tpu_custom_call.1} parent=1 // loop_header_branch
      %16 = sbr.rel (%p14) target = $region8
    $region5: #{tpu_custom_call.1} parent=1 // loop_body
      %s18 = ssub.s32 %s13, 1
      %s19 = ssub.s32 %s13, 2
      %s20 = sadd.s32 %s13, 1
      %s22 = sadd.s32 %s21, 1
      %p25 = scmp.eq.s32.totalorder %s13, 2
      %p26 = scmp.ne.s32.totalorder %s21, %s23
      %p27 = scmp.eq.s32.totalorder %s13, 0
      %p28 = por %p26, %p27
      %p29 = scmp.ne.s32.totalorder %s21, %s23
      %p30 = scmp.eq.s32.totalorder %s18, 2
      %p31 = por %p29, %p30
      %p32 = scmp.ne.s32.totalorder %s23, %s24
      %p33 = scmp.eq.s32.totalorder %s18, 0
      %p34 = por %p32, %p33
      %p35 = scmp.ne.s32.totalorder %s23, %s24
      %p36 = scmp.eq.s32.totalorder %s19, 2
      %p37 = por %p35, %p36
      %p39 = scmp.ne.s32.totalorder %s24, %s38
      %p40 = scmp.eq.s32.totalorder %s19, 0
      %p41 = por %p39, %p40
      %s42 = ssub.s32 %s13, %s20
      %p43 = scmp.eq.s32.totalorder %s42, 0
      %s45 = sadd.s32 %s44, 1
      %s46 = scalar_select %p43, %s44, %s45
      %p49 = pneg %p43
      %p50 = scmp.eq.s32.totalorder %s13, 2
      %p51 = por %p49, %p50
      %p52 = scmp.ne.s32.totalorder %s44, %s47
      %p53 = scmp.eq.s32.totalorder %s13, 0
      %p54 = por %p52, %p53
      %p55 = scmp.ne.s32.totalorder %s44, %s47
      %p56 = scmp.eq.s32.totalorder %s18, 2
      %p57 = por %p55, %p56
      %p58 = scmp.ne.s32.totalorder %s47, %s48
      %p59 = scmp.eq.s32.totalorder %s18, 0
      %p60 = por %p58, %p59
      %p61 = scmp.ne.s32.totalorder %s47, %s48
      %p62 = scmp.eq.s32.totalorder %s19, 2
      %p63 = por %p61, %p62
      %p65 = scmp.ne.s32.totalorder %s48, %s64
      %p66 = scmp.eq.s32.totalorder %s19, 0
      %p67 = por %p65, %p66
      %s68 = ssub.s32 %s13, %s20
      %p69 = scmp.eq.s32.totalorder %s68, 0
      %s71 = sadd.s32 %s70, 1
      %s72 = scalar_select %p69, %s70, %s71
      %p75 = pneg %p69
      %p76 = scmp.eq.s32.totalorder %s13, 2
      %p77 = por %p75, %p76
      %p78 = scmp.ne.s32.totalorder %s70, %s73
      %p79 = scmp.eq.s32.totalorder %s13, 0
      %p80 = por %p78, %p79
      %p81 = scmp.ne.s32.totalorder %s70, %s73
      %p82 = scmp.eq.s32.totalorder %s18, 2
      %p83 = por %p81, %p82
      %p84 = scmp.ne.s32.totalorder %s73, %s74
      %p85 = scmp.eq.s32.totalorder %s18, 0
      %p86 = por %p84, %p85
      %p87 = scmp.ne.s32.totalorder %s73, %s74
      %p88 = scmp.eq.s32.totalorder %s19, 2
      %p89 = por %p87, %p88
      %p91 = scmp.ne.s32.totalorder %s74, %s90
      %p92 = scmp.eq.s32.totalorder %s19, 0
      %p93 = por %p91, %p92
      %s94 = ssub.s32 %s13, %s20
      %p95 = scmp.eq.s32.totalorder %s94, 0
      %s97 = sadd.s32 %s96, 1
      %s98 = scalar_select %p95, %s96, %s97
      %p101 = pneg %p95
      %p102 = scmp.eq.s32.totalorder %s13, 2
      %p103 = por %p101, %p102
      %p104 = scmp.ne.s32.totalorder %s96, %s99
      %p105 = scmp.eq.s32.totalorder %s13, 0
      %p106 = por %p104, %p105
      %p107 = scmp.ne.s32.totalorder %s96, %s99
      %p108 = scmp.eq.s32.totalorder %s18, 2
      %p109 = por %p107, %p108
      %p110 = scmp.ne.s32.totalorder %s99, %s100
      %p111 = scmp.eq.s32.totalorder %s18, 0
      %p112 = por %p110, %p111
      %p113 = scmp.ne.s32.totalorder %s99, %s100
      %p114 = scmp.eq.s32.totalorder %s19, 2
      %p115 = por %p113, %p114
      %p117 = scmp.ne.s32.totalorder %s100, %s116
      %p118 = scmp.eq.s32.totalorder %s19, 0
      %p119 = por %p117, %p118
      %s120 = ssub.s32 %s13, %s20
      %p121 = scmp.eq.s32.totalorder %s120, 0
      %s123 = sadd.s32 %s122, 1
      %s124 = scalar_select %p121, %s122, %s123
      %p127 = pneg %p121
      %p128 = scmp.eq.s32.totalorder %s13, 2
      %p129 = por %p127, %p128
      %p130 = scmp.ne.s32.totalorder %s122, %s125
      %p131 = scmp.eq.s32.totalorder %s13, 0
      %p132 = por %p130, %p131
      %p133 = scmp.ne.s32.totalorder %s122, %s125
      %p134 = scmp.eq.s32.totalorder %s18, 2
      %p135 = por %p133, %p134
      %p136 = scmp.ne.s32.totalorder %s125, %s126
      %p137 = scmp.eq.s32.totalorder %s18, 0
      %p138 = por %p136, %p137
      %p139 = scmp.ne.s32.totalorder %s125, %s126
      %p140 = scmp.eq.s32.totalorder %s19, 2
      %p141 = por %p139, %p140
      %p143 = scmp.ne.s32.totalorder %s126, %s142
      %p144 = scmp.eq.s32.totalorder %s19, 0
      %p145 = por %p143, %p144
      %p146 = scmp.le.s32.totalorder 1, %s13
      %p147 = scmp.lt.s32.totalorder %s13, 4
      %p148 = pnand %p146, %p147
      %p149 = pneg %p148
      // Predicated region
      $region9: #{tpu_custom_call.1} parent=5 // pred_check
        _
      $region10: #{tpu_custom_call.1} parent=5 // pred_check_branch
        %151 = sbr.rel (%p148) target = $region12
      $region11: #{tpu_custom_call.1} parent=5 // pred_region
        %s152 = ssub.s32 %s13, 1
        // Predicated region
        $region13: #{tpu_custom_call.1} parent=11 // pred_check
          %p153 = pneg %p34
        $region14: #{tpu_custom_call.1} parent=11 // pred_check_branch
          %155 = sbr.rel (%p153) target = $region16
        $region15: #{tpu_custom_call.1} parent=11 // pred_region
          _
        $region16: #{tpu_custom_call.1} parent=11 // pred_fallthru
          _
      $region12: #{tpu_custom_call.1} parent=5 // pred_fallthru
        _
      %p156 = scmp.lt.s32.totalorder %s13, 3
      // Predicated region
      $region17: #{tpu_custom_call.1} parent=5 // pred_check
        %p157 = pneg %p156
      $region18: #{tpu_custom_call.1} parent=5 // pred_check_branch
        %159 = sbr.rel (%p157) target = $region20
      $region19: #{tpu_custom_call.1} parent=5 // pred_region
        // Predicated region
        $region21: #{tpu_custom_call.1} parent=19 // pred_check
          %p160 = pneg %p54
        $region22: #{tpu_custom_call.1} parent=19 // pred_check_branch
          %162 = sbr.rel (%p160) target = $region24
        $region23: #{tpu_custom_call.1} parent=19 // pred_region
          %s163 = smul.u32 16, %s13
          %p164 = scmp.lt.s32.totalorder %s163, 47
          %s165 = scalar_select %p164, %s163, 47
          %s166 = smul.addr %s165, 4
          %s167 = scalar_lea.vmem %s1, %s166
          %s168 = smul.u32 16, %s13
        $region24: #{tpu_custom_call.1} parent=19 // pred_fallthru
          _
        // Predicated region
        $region25: #{tpu_custom_call.1} parent=19 // pred_check
          %p169 = pneg %p80
        $region26: #{tpu_custom_call.1} parent=19 // pred_check_branch
          %171 = sbr.rel (%p169) target = $region28
        $region27: #{tpu_custom_call.1} parent=19 // pred_region
          %s172 = smul.u32 16, %s13
          %p173 = scmp.lt.s32.totalorder %s172, 47
          %s174 = scalar_select %p173, %s172, 47
          %s175 = smul.addr %s174, 8
          %s176 = scalar_lea.vmem %s2, %s175
          %s177 = smul.u32 16, %s13
        $region28: #{tpu_custom_call.1} parent=19 // pred_fallthru
          _
        // Predicated region
        $region29: #{tpu_custom_call.1} parent=19 // pred_check
          %p178 = pneg %p106
        $region30: #{tpu_custom_call.1} parent=19 // pred_check_branch
          %180 = sbr.rel (%p178) target = $region32
        $region31: #{tpu_custom_call.1} parent=19 // pred_region
          %s181 = smul.u32 16, %s13
          %p182 = scmp.lt.s32.totalorder %s181, 47
          %s183 = scalar_select %p182, %s181, 47
          %s184 = smul.addr %s183, 8
          %s185 = scalar_lea.vmem %s3, %s184
          %s186 = smul.u32 16, %s13
        $region32: #{tpu_custom_call.1} parent=19 // pred_fallthru
          _
      $region20: #{tpu_custom_call.1} parent=5 // pred_fallthru
        _
      %p187 = scmp.le.s32.totalorder 1, %s13
      %p188 = scmp.lt.s32.totalorder %s13, 4
      %p189 = pnand %p187, %p188
      %p190 = pneg %p189
      // Predicated region
      $region33: #{tpu_custom_call.1} parent=5 // pred_check
        _
      $region34: #{tpu_custom_call.1} parent=5 // pred_check_branch
        %192 = sbr.rel (%p189) target = $region36
      $region35: #{tpu_custom_call.1} parent=5 // pred_region
        %s193 = ssub.s32 %s13, 1
        %p194 = pneg %p34
        %p195 = pneg %p31
        %s196 = smul.u32 16, %s18
        %p197 = scmp.lt.s32.totalorder %s196, 47
        %s198 = scalar_select %p197, %s196, 47
        %s199 = smul.addr %s198, 4
        %s200 = scalar_lea.vmem %s1, %s199
        %p201 = pneg %p60
        %p202 = pneg %p57
        %s203 = smul.u32 16, %s18
        %p204 = scmp.lt.s32.totalorder %s203, 47
        %s205 = scalar_select %p204, %s203, 47
        %s206 = smul.addr %s205, 8
        %s207 = scalar_lea.vmem %s2, %s206
        %p208 = pneg %p86
        %p209 = pneg %p83
        %s210 = smul.u32 16, %s18
        %p211 = scmp.lt.s32.totalorder %s210, 47
        %s212 = scalar_select %p211, %s210, 47
        %s213 = smul.addr %s212, 8
        %s214 = scalar_lea.vmem %s3, %s213
        %p215 = pneg %p112
        %p216 = pneg %p109
        %p217 = pneg %p138
        %p218 = pneg %p135
        %s219 = sand.u32 %s125, 1
        %s220 = scalar_lea.sflag [#allocation3], %s219
        %s221 = sand.u32 %s125, 1
        %s222 = smul.addr %s221, 512
        %s223 = scalar_lea.vmem [#allocation2], %s222
        %s224 = smul.u32 16, %s18
        %p225 = scmp.lt.s32.totalorder %s224, 47
        %s226 = scalar_select %p225, %s224, 47
        %s227 = smul.addr %s226, 4
        %s228 = scalar_lea.vmem %s1, %s227
        %s229 = smul.u32 16, %s18
        %s230 = smul.u32 16, %s18
        %p231 = scmp.lt.s32.totalorder %s230, 47
        %s232 = scalar_select %p231, %s230, 47
        %s233 = smul.addr %s232, 8
        %s234 = scalar_lea.vmem %s2, %s233
        %s235 = smul.u32 16, %s18
        %s236 = smul.u32 16, %s18
        %p237 = scmp.lt.s32.totalorder %s236, 47
        %s238 = scalar_select %p237, %s236, 47
        %s239 = smul.addr %s238, 8
        %s240 = scalar_lea.vmem %s3, %s239
        %s241 = smul.u32 16, %s18
        %s242 = smul.u32 16, %s18
        %v244 = vld [vmem:[%s228] sm:$0xf]
        %v245 = vld [vmem:[%s228 + $0x4] sm:$0xf]
        %v246 = vld [vmem:[%s228 + $0x8] sm:$0xf]
        %v247 = vld [vmem:[%s228 + $0xc] sm:$0xf]
        %v248 = vld [vmem:[%s228 + $0x10] sm:$0xf]
        %v249 = vld [vmem:[%s228 + $0x14] sm:$0xf]
        %v250 = vld [vmem:[%s228 + $0x18] sm:$0xf]
        %v251 = vld [vmem:[%s228 + $0x1c] sm:$0xf]
        %v252 = vld [vmem:[%s228 + $0x20] sm:$0xf]
        %v253 = vld [vmem:[%s228 + $0x24] sm:$0xf]
        %v254 = vld [vmem:[%s228 + $0x28] sm:$0xf]
        %v255 = vld [vmem:[%s228 + $0x2c] sm:$0xf]
        %v256 = vld [vmem:[%s228 + $0x30] sm:$0xf]
        %v257 = vld [vmem:[%s228 + $0x34] sm:$0xf]
        %v258 = vld [vmem:[%s228 + $0x38] sm:$0xf]
        %v259 = vld [vmem:[%s228 + $0x3c] sm:$0xf]
        %v260 = vld [vmem:[%s0] sm:$0xff]
        %v261 = vld [vmem:[%s0 + $0x8] sm:$0xff]
        %v262 = vld [vmem:[%s0 + $0x10] sm:$0xff]
        %v263 = vld [vmem:[%s0 + $0x18] sm:$0xff]
        %v264 = vld [vmem:[%s0 + $0x20] sm:$0xff]
        %v265 = vld [vmem:[%s0 + $0x28] sm:$0xff]
        %v266 = vld [vmem:[%s0 + $0x30] sm:$0xff]
        %v267 = vld [vmem:[%s0 + $0x38] sm:$0xff]
        %v284 = vunpack.c.l.b16 %v244
        %v285 = vunpack.c.l.b16 %v245
        %v286 = vunpack.c.l.b16 %v246
        %v287 = vunpack.c.l.b16 %v247
        %v288 = vunpack.c.l.b16 %v248
        %v289 = vunpack.c.l.b16 %v249
        %v290 = vunpack.c.l.b16 %v250
        %v291 = vunpack.c.l.b16 %v251
        %v292 = vunpack.c.l.b16 %v252
        %v293 = vunpack.c.l.b16 %v253
        %v294 = vunpack.c.l.b16 %v254
        %v295 = vunpack.c.l.b16 %v255
        %v296 = vunpack.c.l.b16 %v256
        %v297 = vunpack.c.l.b16 %v257
        %v298 = vunpack.c.l.b16 %v258
        %v299 = vunpack.c.l.b16 %v259
        %v300 = vpack.c.b16 %v285, %v284
        %v301 = vpack.c.b16 %v287, %v286
        %v302 = vpack.c.b16 %v289, %v288
        %v303 = vpack.c.b16 %v291, %v290
        %v304 = vpack.c.b16 %v293, %v292
        %v305 = vpack.c.b16 %v295, %v294
        %v306 = vpack.c.b16 %v297, %v296
        %v307 = vpack.c.b16 %v299, %v298
        %v316 = vunpack.c.l.b16 %v260
        %v317 = vunpack.c.h.b16 %v260
        %v318 = vunpack.c.l.b16 %v261
        %v319 = vunpack.c.h.b16 %v261
        %v320 = vunpack.c.l.b16 %v262
        %v321 = vunpack.c.h.b16 %v262
        %v322 = vunpack.c.l.b16 %v263
        %v323 = vunpack.c.h.b16 %v263
        %v324 = vunpack.c.l.b16 %v264
        %v325 = vunpack.c.h.b16 %v264
        %v326 = vunpack.c.l.b16 %v265
        %v327 = vunpack.c.h.b16 %v265
        %v328 = vunpack.c.l.b16 %v266
        %v329 = vunpack.c.h.b16 %v266
        %v330 = vunpack.c.l.b16 %v267
        %v331 = vunpack.c.h.b16 %v267
        %v332 = vpack.c.b16 %v318, %v316
        %v333 = vpack.c.b16 %v319, %v317
        %v334 = vpack.c.b16 %v322, %v320
        %v335 = vpack.c.b16 %v323, %v321
        %v336 = vpack.c.b16 %v326, %v324
        %v337 = vpack.c.b16 %v327, %v325
        %v338 = vpack.c.b16 %v330, %v328
        %v339 = vpack.c.b16 %v331, %v329
        %vm348 = vcmask 523264
        %v350 = vsel %vm348, %v300, 0
        %v353 = vsel %vm348, %v301, 0
        %v356 = vsel %vm348, %v302, 0
        %v359 = vsel %vm348, %v303, 0
        %v362 = vsel %vm348, %v304, 0
        %v365 = vsel %vm348, %v305, 0
        %v368 = vsel %vm348, %v306, 0
        %v371 = vsel %vm348, %v307, 0
        %373 = vmatprep.subr.bf16.mxu0 0
        %374 = vmatpush1.bf16.msra.mxu0 0
        %375 = vmatprep.subr.bf16.mxu0 0
        %376 = vmatpush1.bf16.msra.mxu0 0
        %377 = vmatprep.subr.bf16.mxu0 0
        %378 = vmatpush1.bf16.msra.mxu0 0
        %379 = vmatprep.subr.bf16.mxu0 0
        %380 = vmatpush1.bf16.msra.mxu0 0
        %381 = vmatprep.subr.bf16.mxu0 %v339
        %382 = vmatpush1.bf16.msra.mxu0 %v338
        %383 = vmatprep.subr.bf16.mxu0 %v337
        %384 = vmatpush1.bf16.msra.mxu0 %v336
        %385 = vmatprep.subr.bf16.mxu0 %v335
        %386 = vmatpush1.bf16.msra.mxu0 %v334
        %387 = vmatprep.subr.bf16.mxu0 %v333
        %388 = vmatpush1.bf16.msra.mxu0 %v332
        %389 = vmatprep.subr.bf16.mxu0 0
        %390 = vmatpush2.bf16.msra.mxu0 0
        %391 = vmatprep.subr.bf16.mxu0 0
        %392 = vmatpush2.bf16.msra.mxu0 0
        %393 = vmatprep.subr.bf16.mxu0 0
        %394 = vmatpush2.bf16.msra.mxu0 0
        %395 = vmatprep.subr.bf16.mxu0 0
        %396 = vmatpush2.bf16.msra.mxu0 0
        %397 = vmatprep.subr.bf16.mxu0 0
        %398 = vmatpush2.bf16.msra.mxu0 0
        %399 = vmatprep.subr.bf16.mxu0 0
        %400 = vmatpush2.bf16.msra.mxu0 0
        %401 = vmatprep.subr.bf16.mxu0 0
        %402 = vmatpush2.bf16.msra.mxu0 0
        %403 = vmatprep.subr.bf16.mxu0 0
        %404 = vmatpush2.bf16.msra.mxu0 0
        %405 = vmatprep.mubr.bf16.mxu0 0
        %406 = vmatmul.mubr.bf16.gmra.mxu0 %v350
        %v407 = vpop.f32.mrf.mxu0
        %v408 = vadd.f32 0.0, %v407
        %v409 = vpop.f32.mrf.mxu0
        %v410 = vadd.f32 0.0, %v409
        %v411 = vpop.f32.mrf.mxu0
        %v412 = vadd.f32 0.0, %v411
        %v413 = vpop.f32.mrf.mxu0
        %v414 = vadd.f32 0.0, %v413
        %415 = vmatprep.mubr.bf16.mxu0 0
        %416 = vmatmul.mubr.bf16.gmra.mxu0 %v353
        %v417 = vpop.f32.mrf.mxu0
        %v418 = vadd.f32 0.0, %v417
        %v419 = vpop.f32.mrf.mxu0
        %v420 = vadd.f32 0.0, %v419
        %v421 = vpop.f32.mrf.mxu0
        %v422 = vadd.f32 0.0, %v421
        %v423 = vpop.f32.mrf.mxu0
        %v424 = vadd.f32 0.0, %v423
        %425 = vmatprep.mubr.bf16.mxu0 0
        %426 = vmatmul.mubr.bf16.gmra.mxu0 %v356
        %v427 = vpop.f32.mrf.mxu0
        %v428 = vadd.f32 0.0, %v427
        %v429 = vpop.f32.mrf.mxu0
        %v430 = vadd.f32 0.0, %v429
        %v431 = vpop.f32.mrf.mxu0
        %v432 = vadd.f32 0.0, %v431
        %v433 = vpop.f32.mrf.mxu0
        %v434 = vadd.f32 0.0, %v433
        %435 = vmatprep.mubr.bf16.mxu0 0
        %436 = vmatmul.mubr.bf16.gmra.mxu0 %v359
        %v437 = vpop.f32.mrf.mxu0
        %v438 = vadd.f32 0.0, %v437
        %v439 = vpop.f32.mrf.mxu0
        %v440 = vadd.f32 0.0, %v439
        %v441 = vpop.f32.mrf.mxu0
        %v442 = vadd.f32 0.0, %v441
        %v443 = vpop.f32.mrf.mxu0
        %v444 = vadd.f32 0.0, %v443
        %445 = vmatprep.mubr.bf16.mxu0 0
        %446 = vmatmul.mubr.bf16.gmra.mxu0 %v362
        %v447 = vpop.f32.mrf.mxu0
        %v448 = vadd.f32 0.0, %v447
        %v449 = vpop.f32.mrf.mxu0
        %v450 = vadd.f32 0.0, %v449
        %v451 = vpop.f32.mrf.mxu0
        %v452 = vadd.f32 0.0, %v451
        %v453 = vpop.f32.mrf.mxu0
        %v454 = vadd.f32 0.0, %v453
        %455 = vmatprep.mubr.bf16.mxu0 0
        %456 = vmatmul.mubr.bf16.gmra.mxu0 %v365
        %v457 = vpop.f32.mrf.mxu0
        %v458 = vadd.f32 0.0, %v457
        %v459 = vpop.f32.mrf.mxu0
        %v460 = vadd.f32 0.0, %v459
        %v461 = vpop.f32.mrf.mxu0
        %v462 = vadd.f32 0.0, %v461
        %v463 = vpop.f32.mrf.mxu0
        %v464 = vadd.f32 0.0, %v463
        %465 = vmatprep.mubr.bf16.mxu0 0
        %466 = vmatmul.mubr.bf16.gmra.mxu0 %v368
        %v467 = vpop.f32.mrf.mxu0
        %v468 = vadd.f32 0.0, %v467
        %v469 = vpop.f32.mrf.mxu0
        %v470 = vadd.f32 0.0, %v469
        %v471 = vpop.f32.mrf.mxu0
        %v472 = vadd.f32 0.0, %v471
        %v473 = vpop.f32.mrf.mxu0
        %v474 = vadd.f32 0.0, %v473
        %475 = vmatprep.mubr.bf16.mxu0 0
        %476 = vmatmul.mubr.bf16.gmra.mxu0 %v371
        %v477 = vpop.f32.mrf.mxu0
        %v478 = vadd.f32 0.0, %v477
        %v479 = vpop.f32.mrf.mxu0
        %v480 = vadd.f32 0.0, %v479
        %v481 = vpop.f32.mrf.mxu0
        %v482 = vadd.f32 0.0, %v481
        %v483 = vpop.f32.mrf.mxu0
        %v484 = vadd.f32 0.0, %v483
        %485 = vdwg.mxu0
        %v486 = vadd.f32 %v408, %v410
        %487 = vadd.xlane.f32.xlu0 %v486
        %v488 = vpop.xlane.xlu0 %487
        %v489 = vadd.f32 %v412, %v414
        %490 = vadd.xlane.f32.xlu0 %v489
        %v491 = vpop.xlane.xlu0 %490
        %v492 = vadd.f32 %v418, %v420
        %493 = vadd.xlane.f32.xlu0 %v492
        %v494 = vpop.xlane.xlu0 %493
        %v495 = vadd.f32 %v422, %v424
        %496 = vadd.xlane.f32.xlu0 %v495
        %v497 = vpop.xlane.xlu0 %496
        %v498 = vadd.f32 %v428, %v430
        %499 = vadd.xlane.f32.xlu0 %v498
        %v500 = vpop.xlane.xlu0 %499
        %v501 = vadd.f32 %v432, %v434
        %502 = vadd.xlane.f32.xlu0 %v501
        %v503 = vpop.xlane.xlu0 %502
        %v504 = vadd.f32 %v438, %v440
        %505 = vadd.xlane.f32.xlu0 %v504
        %v506 = vpop.xlane.xlu0 %505
        %v507 = vadd.f32 %v442, %v444
        %508 = vadd.xlane.f32.xlu0 %v507
        %v509 = vpop.xlane.xlu0 %508
        %v510 = vadd.f32 %v448, %v450
        %511 = vadd.xlane.f32.xlu0 %v510
        %v512 = vpop.xlane.xlu0 %511
        %v513 = vadd.f32 %v452, %v454
        %514 = vadd.xlane.f32.xlu0 %v513
        %v515 = vpop.xlane.xlu0 %514
        %v516 = vadd.f32 %v458, %v460
        %517 = vadd.xlane.f32.xlu0 %v516
        %v518 = vpop.xlane.xlu0 %517
        %v519 = vadd.f32 %v462, %v464
        %520 = vadd.xlane.f32.xlu0 %v519
        %v521 = vpop.xlane.xlu0 %520
        %v522 = vadd.f32 %v468, %v470
        %523 = vadd.xlane.f32.xlu0 %v522
        %v524 = vpop.xlane.xlu0 %523
        %v525 = vadd.f32 %v472, %v474
        %526 = vadd.xlane.f32.xlu0 %v525
        %v527 = vpop.xlane.xlu0 %526
        %v528 = vadd.f32 %v478, %v480
        %529 = vadd.xlane.f32.xlu0 %v528
        %v530 = vpop.xlane.xlu0 %529
        %v531 = vadd.f32 %v482, %v484
        %532 = vadd.xlane.f32.xlu0 %v531
        %v533 = vpop.xlane.xlu0 %532
        %v534 = vadd.f32 %v488, 0.0
        %v535 = vadd.f32 %v491, 0.0
        %v536 = vadd.f32 %v494, 0.0
        %v537 = vadd.f32 %v497, 0.0
        %v538 = vadd.f32 %v500, 0.0
        %v539 = vadd.f32 %v503, 0.0
        %v540 = vadd.f32 %v506, 0.0
        %v541 = vadd.f32 %v509, 0.0
        %v542 = vadd.f32 %v512, 0.0
        %v543 = vadd.f32 %v515, 0.0
        %v544 = vadd.f32 %v518, 0.0
        %v545 = vadd.f32 %v521, 0.0
        %v546 = vadd.f32 %v524, 0.0
        %v547 = vadd.f32 %v527, 0.0
        %v548 = vadd.f32 %v530, 0.0
        %v549 = vadd.f32 %v533, 0.0
        %s550 = scalar_lea.vmem %s0, 64
        %v551 = vld [vmem:[%s550] sm:$0xff]
        %v552 = vld [vmem:[%s550 + $0x8] sm:$0xff]
        %v553 = vld [vmem:[%s550 + $0x10] sm:$0xff]
        %v554 = vld [vmem:[%s550 + $0x18] sm:$0xff]
        %v555 = vld [vmem:[%s550 + $0x20] sm:$0xff]
        %v556 = vld [vmem:[%s550 + $0x28] sm:$0xff]
        %v557 = vld [vmem:[%s550 + $0x30] sm:$0xff]
        %v558 = vld [vmem:[%s550 + $0x38] sm:$0xff]
        %v567 = vunpack.c.l.b16 %v551
        %v568 = vunpack.c.h.b16 %v551
        %v569 = vunpack.c.l.b16 %v552
        %v570 = vunpack.c.h.b16 %v552
        %v571 = vunpack.c.l.b16 %v553
        %v572 = vunpack.c.h.b16 %v553
        %v573 = vunpack.c.l.b16 %v554
        %v574 = vunpack.c.h.b16 %v554
        %v575 = vunpack.c.l.b16 %v555
        %v576 = vunpack.c.h.b16 %v555
        %v577 = vunpack.c.l.b16 %v556
        %v578 = vunpack.c.h.b16 %v556
        %v579 = vunpack.c.l.b16 %v557
        %v580 = vunpack.c.h.b16 %v557
        %v581 = vunpack.c.l.b16 %v558
        %v582 = vunpack.c.h.b16 %v558
        %v583 = vpack.c.b16 %v569, %v567
        %v584 = vpack.c.b16 %v570, %v568
        %v585 = vpack.c.b16 %v573, %v571
        %v586 = vpack.c.b16 %v574, %v572
        %v587 = vpack.c.b16 %v577, %v575
        %v588 = vpack.c.b16 %v578, %v576
        %v589 = vpack.c.b16 %v581, %v579
        %v590 = vpack.c.b16 %v582, %v580
        %599 = vmatprep.subr.bf16.mxu0 0
        %600 = vmatpush1.bf16.msra.mxu0 0
        %601 = vmatprep.subr.bf16.mxu0 0
        %602 = vmatpush1.bf16.msra.mxu0 0
        %603 = vmatprep.subr.bf16.mxu0 0
        %604 = vmatpush1.bf16.msra.mxu0 0
        %605 = vmatprep.subr.bf16.mxu0 0
        %606 = vmatpush1.bf16.msra.mxu0 0
        %607 = vmatprep.subr.bf16.mxu0 %v590
        %608 = vmatpush1.bf16.msra.mxu0 %v589
        %609 = vmatprep.subr.bf16.mxu0 %v588
        %610 = vmatpush1.bf16.msra.mxu0 %v587
        %611 = vmatprep.subr.bf16.mxu0 %v586
        %612 = vmatpush1.bf16.msra.mxu0 %v585
        %613 = vmatprep.subr.bf16.mxu0 %v584
        %614 = vmatpush1.bf16.msra.mxu0 %v583
        %615 = vmatprep.subr.bf16.mxu0 0
        %616 = vmatpush2.bf16.msra.mxu0 0
        %617 = vmatprep.subr.bf16.mxu0 0
        %618 = vmatpush2.bf16.msra.mxu0 0
        %619 = vmatprep.subr.bf16.mxu0 0
        %620 = vmatpush2.bf16.msra.mxu0 0
        %621 = vmatprep.subr.bf16.mxu0 0
        %622 = vmatpush2.bf16.msra.mxu0 0
        %623 = vmatprep.subr.bf16.mxu0 0
        %624 = vmatpush2.bf16.msra.mxu0 0
        %625 = vmatprep.subr.bf16.mxu0 0
        %626 = vmatpush2.bf16.msra.mxu0 0
        %627 = vmatprep.subr.bf16.mxu0 0
        %628 = vmatpush2.bf16.msra.mxu0 0
        %629 = vmatprep.subr.bf16.mxu0 0
        %630 = vmatpush2.bf16.msra.mxu0 0
        %631 = vmatprep.mubr.bf16.mxu0 0
        %632 = vmatmul.mubr.bf16.gmra.mxu0 %v350
        %v633 = vpop.f32.mrf.mxu0
        %v634 = vadd.f32 0.0, %v633
        %v635 = vpop.f32.mrf.mxu0
        %v636 = vadd.f32 0.0, %v635
        %v637 = vpop.f32.mrf.mxu0
        %v638 = vadd.f32 0.0, %v637
        %v639 = vpop.f32.mrf.mxu0
        %v640 = vadd.f32 0.0, %v639
        %641 = vmatprep.mubr.bf16.mxu0 0
        %642 = vmatmul.mubr.bf16.gmra.mxu0 %v353
        %v643 = vpop.f32.mrf.mxu0
        %v644 = vadd.f32 0.0, %v643
        %v645 = vpop.f32.mrf.mxu0
        %v646 = vadd.f32 0.0, %v645
        %v647 = vpop.f32.mrf.mxu0
        %v648 = vadd.f32 0.0, %v647
        %v649 = vpop.f32.mrf.mxu0
        %v650 = vadd.f32 0.0, %v649
        %651 = vmatprep.mubr.bf16.mxu0 0
        %652 = vmatmul.mubr.bf16.gmra.mxu0 %v356
        %v653 = vpop.f32.mrf.mxu0
        %v654 = vadd.f32 0.0, %v653
        %v655 = vpop.f32.mrf.mxu0
        %v656 = vadd.f32 0.0, %v655
        %v657 = vpop.f32.mrf.mxu0
        %v658 = vadd.f32 0.0, %v657
        %v659 = vpop.f32.mrf.mxu0
        %v660 = vadd.f32 0.0, %v659
        %661 = vmatprep.mubr.bf16.mxu0 0
        %662 = vmatmul.mubr.bf16.gmra.mxu0 %v359
        %v663 = vpop.f32.mrf.mxu0
        %v664 = vadd.f32 0.0, %v663
        %v665 = vpop.f32.mrf.mxu0
        %v666 = vadd.f32 0.0, %v665
        %v667 = vpop.f32.mrf.mxu0
        %v668 = vadd.f32 0.0, %v667
        %v669 = vpop.f32.mrf.mxu0
        %v670 = vadd.f32 0.0, %v669
        %671 = vmatprep.mubr.bf16.mxu0 0
        %672 = vmatmul.mubr.bf16.gmra.mxu0 %v362
        %v673 = vpop.f32.mrf.mxu0
        %v674 = vadd.f32 0.0, %v673
        %v675 = vpop.f32.mrf.mxu0
        %v676 = vadd.f32 0.0, %v675
        %v677 = vpop.f32.mrf.mxu0
        %v678 = vadd.f32 0.0, %v677
        %v679 = vpop.f32.mrf.mxu0
        %v680 = vadd.f32 0.0, %v679
        %681 = vmatprep.mubr.bf16.mxu0 0
        %682 = vmatmul.mubr.bf16.gmra.mxu0 %v365
        %v683 = vpop.f32.mrf.mxu0
        %v684 = vadd.f32 0.0, %v683
        %v685 = vpop.f32.mrf.mxu0
        %v686 = vadd.f32 0.0, %v685
        %v687 = vpop.f32.mrf.mxu0
        %v688 = vadd.f32 0.0, %v687
        %v689 = vpop.f32.mrf.mxu0
        %v690 = vadd.f32 0.0, %v689
        %691 = vmatprep.mubr.bf16.mxu0 0
        %692 = vmatmul.mubr.bf16.gmra.mxu0 %v368
        %v693 = vpop.f32.mrf.mxu0
        %v694 = vadd.f32 0.0, %v693
        %v695 = vpop.f32.mrf.mxu0
        %v696 = vadd.f32 0.0, %v695
        %v697 = vpop.f32.mrf.mxu0
        %v698 = vadd.f32 0.0, %v697
        %v699 = vpop.f32.mrf.mxu0
        %v700 = vadd.f32 0.0, %v699
        %701 = vmatprep.mubr.bf16.mxu0 0
        %702 = vmatmul.mubr.bf16.gmra.mxu0 %v371
        %v703 = vpop.f32.mrf.mxu0
        %v704 = vadd.f32 0.0, %v703
        %v705 = vpop.f32.mrf.mxu0
        %v706 = vadd.f32 0.0, %v705
        %v707 = vpop.f32.mrf.mxu0
        %v708 = vadd.f32 0.0, %v707
        %v709 = vpop.f32.mrf.mxu0
        %v710 = vadd.f32 0.0, %v709
        %711 = vdwg.mxu0
        %v712 = vadd.f32 %v634, %v636
        %713 = vadd.xlane.f32.xlu0 %v712
        %v714 = vpop.xlane.xlu0 %713
        %v715 = vadd.f32 %v638, %v640
        %716 = vadd.xlane.f32.xlu0 %v715
        %v717 = vpop.xlane.xlu0 %716
        %v718 = vadd.f32 %v644, %v646
        %719 = vadd.xlane.f32.xlu0 %v718
        %v720 = vpop.xlane.xlu0 %719
        %v721 = vadd.f32 %v648, %v650
        %722 = vadd.xlane.f32.xlu0 %v721
        %v723 = vpop.xlane.xlu0 %722
        %v724 = vadd.f32 %v654, %v656
        %725 = vadd.xlane.f32.xlu0 %v724
        %v726 = vpop.xlane.xlu0 %725
        %v727 = vadd.f32 %v658, %v660
        %728 = vadd.xlane.f32.xlu0 %v727
        %v729 = vpop.xlane.xlu0 %728
        %v730 = vadd.f32 %v664, %v666
        %731 = vadd.xlane.f32.xlu0 %v730
        %v732 = vpop.xlane.xlu0 %731
        %v733 = vadd.f32 %v668, %v670
        %734 = vadd.xlane.f32.xlu0 %v733
        %v735 = vpop.xlane.xlu0 %734
        %v736 = vadd.f32 %v674, %v676
        %737 = vadd.xlane.f32.xlu0 %v736
        %v738 = vpop.xlane.xlu0 %737
        %v739 = vadd.f32 %v678, %v680
        %740 = vadd.xlane.f32.xlu0 %v739
        %v741 = vpop.xlane.xlu0 %740
        %v742 = vadd.f32 %v684, %v686
        %743 = vadd.xlane.f32.xlu0 %v742
        %v744 = vpop.xlane.xlu0 %743
        %v745 = vadd.f32 %v688, %v690
        %746 = vadd.xlane.f32.xlu0 %v745
        %v747 = vpop.xlane.xlu0 %746
        %v748 = vadd.f32 %v694, %v696
        %749 = vadd.xlane.f32.xlu0 %v748
        %v750 = vpop.xlane.xlu0 %749
        %v751 = vadd.f32 %v698, %v700
        %752 = vadd.xlane.f32.xlu0 %v751
        %v753 = vpop.xlane.xlu0 %752
        %v754 = vadd.f32 %v704, %v706
        %755 = vadd.xlane.f32.xlu0 %v754
        %v756 = vpop.xlane.xlu0 %755
        %v757 = vadd.f32 %v708, %v710
        %758 = vadd.xlane.f32.xlu0 %v757
        %v759 = vpop.xlane.xlu0 %758
        %v760 = vadd.f32 %v534, %v714
        %v761 = vadd.f32 %v535, %v717
        %v762 = vadd.f32 %v536, %v720
        %v763 = vadd.f32 %v537, %v723
        %v764 = vadd.f32 %v538, %v726
        %v765 = vadd.f32 %v539, %v729
        %v766 = vadd.f32 %v540, %v732
        %v767 = vadd.f32 %v541, %v735
        %v768 = vadd.f32 %v542, %v738
        %v769 = vadd.f32 %v543, %v741
        %v770 = vadd.f32 %v544, %v744
        %v771 = vadd.f32 %v545, %v747
        %v772 = vadd.f32 %v546, %v750
        %v773 = vadd.f32 %v547, %v753
        %v774 = vadd.f32 %v548, %v756
        %v775 = vadd.f32 %v549, %v759
        %v776 = vrcp.pop 512.0
        %v777 = vmul.f32 %v760, %v776
        %v778 = vmul.f32 %v761, %v776
        %v779 = vmul.f32 %v762, %v776
        %v780 = vmul.f32 %v763, %v776
        %v781 = vmul.f32 %v764, %v776
        %v782 = vmul.f32 %v765, %v776
        %v783 = vmul.f32 %v766, %v776
        %v784 = vmul.f32 %v767, %v776
        %v785 = vmul.f32 %v768, %v776
        %v786 = vmul.f32 %v769, %v776
        %v787 = vmul.f32 %v770, %v776
        %v788 = vmul.f32 %v771, %v776
        %v789 = vmul.f32 %v772, %v776
        %v790 = vmul.f32 %v773, %v776
        %v791 = vmul.f32 %v774, %v776
        %v792 = vmul.f32 %v775, %v776
        %v793 = vsub.f32 %v408, %v777
        %v794 = vsub.f32 %v410, %v777
        %v795 = vsub.f32 %v412, %v778
        %v796 = vsub.f32 %v414, %v778
        %v797 = vsub.f32 %v418, %v779
        %v798 = vsub.f32 %v420, %v779
        %v799 = vsub.f32 %v422, %v780
        %v800 = vsub.f32 %v424, %v780
        %v801 = vsub.f32 %v428, %v781
        %v802 = vsub.f32 %v430, %v781
        %v803 = vsub.f32 %v432, %v782
        %v804 = vsub.f32 %v434, %v782
        %v805 = vsub.f32 %v438, %v783
        %v806 = vsub.f32 %v440, %v783
        %v807 = vsub.f32 %v442, %v784
        %v808 = vsub.f32 %v444, %v784
        %v809 = vsub.f32 %v448, %v785
        %v810 = vsub.f32 %v450, %v785
        %v811 = vsub.f32 %v452, %v786
        %v812 = vsub.f32 %v454, %v786
        %v813 = vsub.f32 %v458, %v787
        %v814 = vsub.f32 %v460, %v787
        %v815 = vsub.f32 %v462, %v788
        %v816 = vsub.f32 %v464, %v788
        %v817 = vsub.f32 %v468, %v789
        %v818 = vsub.f32 %v470, %v789
        %v819 = vsub.f32 %v472, %v790
        %v820 = vsub.f32 %v474, %v790
        %v821 = vsub.f32 %v478, %v791
        %v822 = vsub.f32 %v480, %v791
        %v823 = vsub.f32 %v482, %v792
        %v824 = vsub.f32 %v484, %v792
        %v825 = vmul.f32 %v793, %v793
        %v826 = vmul.f32 %v794, %v794
        %v827 = vmul.f32 %v795, %v795
        %v828 = vmul.f32 %v796, %v796
        %v829 = vmul.f32 %v797, %v797
        %v830 = vmul.f32 %v798, %v798
        %v831 = vmul.f32 %v799, %v799
        %v832 = vmul.f32 %v800, %v800
        %v833 = vmul.f32 %v801, %v801
        %v834 = vmul.f32 %v802, %v802
        %v835 = vmul.f32 %v803, %v803
        %v836 = vmul.f32 %v804, %v804
        %v837 = vmul.f32 %v805, %v805
        %v838 = vmul.f32 %v806, %v806
        %v839 = vmul.f32 %v807, %v807
        %v840 = vmul.f32 %v808, %v808
        %v841 = vmul.f32 %v809, %v809
        %v842 = vmul.f32 %v810, %v810
        %v843 = vmul.f32 %v811, %v811
        %v844 = vmul.f32 %v812, %v812
        %v845 = vmul.f32 %v813, %v813
        %v846 = vmul.f32 %v814, %v814
        %v847 = vmul.f32 %v815, %v815
        %v848 = vmul.f32 %v816, %v816
        %v849 = vmul.f32 %v817, %v817
        %v850 = vmul.f32 %v818, %v818
        %v851 = vmul.f32 %v819, %v819
        %v852 = vmul.f32 %v820, %v820
        %v853 = vmul.f32 %v821, %v821
        %v854 = vmul.f32 %v822, %v822
        %v855 = vmul.f32 %v823, %v823
        %v856 = vmul.f32 %v824, %v824
        %v857 = vadd.f32 %v825, %v826
        %858 = vadd.xlane.f32.xlu0 %v857
        %v859 = vpop.xlane.xlu0 %858
        %v860 = vadd.f32 %v827, %v828
        %861 = vadd.xlane.f32.xlu0 %v860
        %v862 = vpop.xlane.xlu0 %861
        %v863 = vadd.f32 %v829, %v830
        %864 = vadd.xlane.f32.xlu0 %v863
        %v865 = vpop.xlane.xlu0 %864
        %v866 = vadd.f32 %v831, %v832
        %867 = vadd.xlane.f32.xlu0 %v866
        %v868 = vpop.xlane.xlu0 %867
        %v869 = vadd.f32 %v833, %v834
        %870 = vadd.xlane.f32.xlu0 %v869
        %v871 = vpop.xlane.xlu0 %870
        %v872 = vadd.f32 %v835, %v836
        %873 = vadd.xlane.f32.xlu0 %v872
        %v874 = vpop.xlane.xlu0 %873
        %v875 = vadd.f32 %v837, %v838
        %876 = vadd.xlane.f32.xlu0 %v875
        %v877 = vpop.xlane.xlu0 %876
        %v878 = vadd.f32 %v839, %v840
        %879 = vadd.xlane.f32.xlu0 %v878
        %v880 = vpop.xlane.xlu0 %879
        %v881 = vadd.f32 %v841, %v842
        %882 = vadd.xlane.f32.xlu0 %v881
        %v883 = vpop.xlane.xlu0 %882
        %v884 = vadd.f32 %v843, %v844
        %885 = vadd.xlane.f32.xlu0 %v884
        %v886 = vpop.xlane.xlu0 %885
        %v887 = vadd.f32 %v845, %v846
        %888 = vadd.xlane.f32.xlu0 %v887
        %v889 = vpop.xlane.xlu0 %888
        %v890 = vadd.f32 %v847, %v848
        %891 = vadd.xlane.f32.xlu0 %v890
        %v892 = vpop.xlane.xlu0 %891
        %v893 = vadd.f32 %v849, %v850
        %894 = vadd.xlane.f32.xlu0 %v893
        %v895 = vpop.xlane.xlu0 %894
        %v896 = vadd.f32 %v851, %v852
        %897 = vadd.xlane.f32.xlu0 %v896
        %v898 = vpop.xlane.xlu0 %897
        %v899 = vadd.f32 %v853, %v854
        %900 = vadd.xlane.f32.xlu0 %v899
        %v901 = vpop.xlane.xlu0 %900
        %v902 = vadd.f32 %v855, %v856
        %903 = vadd.xlane.f32.xlu0 %v902
        %v904 = vpop.xlane.xlu0 %903
        %v905 = vadd.f32 %v859, 0.0
        %v906 = vadd.f32 %v862, 0.0
        %v907 = vadd.f32 %v865, 0.0
        %v908 = vadd.f32 %v868, 0.0
        %v909 = vadd.f32 %v871, 0.0
        %v910 = vadd.f32 %v874, 0.0
        %v911 = vadd.f32 %v877, 0.0
        %v912 = vadd.f32 %v880, 0.0
        %v913 = vadd.f32 %v883, 0.0
        %v914 = vadd.f32 %v886, 0.0
        %v915 = vadd.f32 %v889, 0.0
        %v916 = vadd.f32 %v892, 0.0
        %v917 = vadd.f32 %v895, 0.0
        %v918 = vadd.f32 %v898, 0.0
        %v919 = vadd.f32 %v901, 0.0
        %v920 = vadd.f32 %v904, 0.0
        %v921 = vsub.f32 %v634, %v777
        %v922 = vsub.f32 %v636, %v777
        %v923 = vsub.f32 %v638, %v778
        %v924 = vsub.f32 %v640, %v778
        %v925 = vsub.f32 %v644, %v779
        %v926 = vsub.f32 %v646, %v779
        %v927 = vsub.f32 %v648, %v780
        %v928 = vsub.f32 %v650, %v780
        %v929 = vsub.f32 %v654, %v781
        %v930 = vsub.f32 %v656, %v781
        %v931 = vsub.f32 %v658, %v782
        %v932 = vsub.f32 %v660, %v782
        %v933 = vsub.f32 %v664, %v783
        %v934 = vsub.f32 %v666, %v783
        %v935 = vsub.f32 %v668, %v784
        %v936 = vsub.f32 %v670, %v784
        %v937 = vsub.f32 %v674, %v785
        %v938 = vsub.f32 %v676, %v785
        %v939 = vsub.f32 %v678, %v786
        %v940 = vsub.f32 %v680, %v786
        %v941 = vsub.f32 %v684, %v787
        %v942 = vsub.f32 %v686, %v787
        %v943 = vsub.f32 %v688, %v788
        %v944 = vsub.f32 %v690, %v788
        %v945 = vsub.f32 %v694, %v789
        %v946 = vsub.f32 %v696, %v789
        %v947 = vsub.f32 %v698, %v790
        %v948 = vsub.f32 %v700, %v790
        %v949 = vsub.f32 %v704, %v791
        %v950 = vsub.f32 %v706, %v791
        %v951 = vsub.f32 %v708, %v792
        %v952 = vsub.f32 %v710, %v792
        %v953 = vmul.f32 %v921, %v921
        %v954 = vmul.f32 %v922, %v922
        %v955 = vmul.f32 %v923, %v923
        %v956 = vmul.f32 %v924, %v924
        %v957 = vmul.f32 %v925, %v925
        %v958 = vmul.f32 %v926, %v926
        %v959 = vmul.f32 %v927, %v927
        %v960 = vmul.f32 %v928, %v928
        %v961 = vmul.f32 %v929, %v929
        %v962 = vmul.f32 %v930, %v930
        %v963 = vmul.f32 %v931, %v931
        %v964 = vmul.f32 %v932, %v932
        %v965 = vmul.f32 %v933, %v933
        %v966 = vmul.f32 %v934, %v934
        %v967 = vmul.f32 %v935, %v935
        %v968 = vmul.f32 %v936, %v936
        %v969 = vmul.f32 %v937, %v937
        %v970 = vmul.f32 %v938, %v938
        %v971 = vmul.f32 %v939, %v939
        %v972 = vmul.f32 %v940, %v940
        %v973 = vmul.f32 %v941, %v941
        %v974 = vmul.f32 %v942, %v942
        %v975 = vmul.f32 %v943, %v943
        %v976 = vmul.f32 %v944, %v944
        %v977 = vmul.f32 %v945, %v945
        %v978 = vmul.f32 %v946, %v946
        %v979 = vmul.f32 %v947, %v947
        %v980 = vmul.f32 %v948, %v948
        %v981 = vmul.f32 %v949, %v949
        %v982 = vmul.f32 %v950, %v950
        %v983 = vmul.f32 %v951, %v951
        %v984 = vmul.f32 %v952, %v952
        %v985 = vadd.f32 %v953, %v954
        %986 = vadd.xlane.f32.xlu0 %v985
        %v987 = vpop.xlane.xlu0 %986
        %v988 = vadd.f32 %v955, %v956
        %989 = vadd.xlane.f32.xlu0 %v988
        %v990 = vpop.xlane.xlu0 %989
        %v991 = vadd.f32 %v957, %v958
        %992 = vadd.xlane.f32.xlu0 %v991
        %v993 = vpop.xlane.xlu0 %992
        %v994 = vadd.f32 %v959, %v960
        %995 = vadd.xlane.f32.xlu0 %v994
        %v996 = vpop.xlane.xlu0 %995
        %v997 = vadd.f32 %v961, %v962
        %998 = vadd.xlane.f32.xlu0 %v997
        %v999 = vpop.xlane.xlu0 %998
        %v1000 = vadd.f32 %v963, %v964
        %1001 = vadd.xlane.f32.xlu0 %v1000
        %v1002 = vpop.xlane.xlu0 %1001
        %v1003 = vadd.f32 %v965, %v966
        %1004 = vadd.xlane.f32.xlu0 %v1003
        %v1005 = vpop.xlane.xlu0 %1004
        %v1006 = vadd.f32 %v967, %v968
        %1007 = vadd.xlane.f32.xlu0 %v1006
        %v1008 = vpop.xlane.xlu0 %1007
        %v1009 = vadd.f32 %v969, %v970
        %1010 = vadd.xlane.f32.xlu0 %v1009
        %v1011 = vpop.xlane.xlu0 %1010
        %v1012 = vadd.f32 %v971, %v972
        %1013 = vadd.xlane.f32.xlu0 %v1012
        %v1014 = vpop.xlane.xlu0 %1013
        %v1015 = vadd.f32 %v973, %v974
        %1016 = vadd.xlane.f32.xlu0 %v1015
        %v1017 = vpop.xlane.xlu0 %1016
        %v1018 = vadd.f32 %v975, %v976
        %1019 = vadd.xlane.f32.xlu0 %v1018
        %v1020 = vpop.xlane.xlu0 %1019
        %v1021 = vadd.f32 %v977, %v978
        %1022 = vadd.xlane.f32.xlu0 %v1021
        %v1023 = vpop.xlane.xlu0 %1022
        %v1024 = vadd.f32 %v979, %v980
        %1025 = vadd.xlane.f32.xlu0 %v1024
        %v1026 = vpop.xlane.xlu0 %1025
        %v1027 = vadd.f32 %v981, %v982
        %1028 = vadd.xlane.f32.xlu0 %v1027
        %v1029 = vpop.xlane.xlu0 %1028
        %v1030 = vadd.f32 %v983, %v984
        %1031 = vadd.xlane.f32.xlu0 %v1030
        %v1032 = vpop.xlane.xlu0 %1031
        %v1033 = vadd.f32 %v905, %v987
        %v1034 = vadd.f32 %v906, %v990
        %v1035 = vadd.f32 %v907, %v993
        %v1036 = vadd.f32 %v908, %v996
        %v1037 = vadd.f32 %v909, %v999
        %v1038 = vadd.f32 %v910, %v1002
        %v1039 = vadd.f32 %v911, %v1005
        %v1040 = vadd.f32 %v912, %v1008
        %v1041 = vadd.f32 %v913, %v1011
        %v1042 = vadd.f32 %v914, %v1014
        %v1043 = vadd.f32 %v915, %v1017
        %v1044 = vadd.f32 %v916, %v1020
        %v1045 = vadd.f32 %v917, %v1023
        %v1046 = vadd.f32 %v918, %v1026
        %v1047 = vadd.f32 %v919, %v1029
        %v1048 = vadd.f32 %v920, %v1032
        %v1049 = vmul.f32 %v1033, %v776
        %v1050 = vmul.f32 %v1034, %v776
        %v1051 = vmul.f32 %v1035, %v776
        %v1052 = vmul.f32 %v1036, %v776
        %v1053 = vmul.f32 %v1037, %v776
        %v1054 = vmul.f32 %v1038, %v776
        %v1055 = vmul.f32 %v1039, %v776
        %v1056 = vmul.f32 %v1040, %v776
        %v1057 = vmul.f32 %v1041, %v776
        %v1058 = vmul.f32 %v1042, %v776
        %v1059 = vmul.f32 %v1043, %v776
        %v1060 = vmul.f32 %v1044, %v776
        %v1061 = vmul.f32 %v1045, %v776
        %v1062 = vmul.f32 %v1046, %v776
        %v1063 = vmul.f32 %v1047, %v776
        %v1064 = vmul.f32 %v1048, %v776
        %v1065 = vadd.f32 %v1049, 1e-05
        %v1066 = vadd.f32 %v1050, 1e-05
        %v1067 = vadd.f32 %v1051, 1e-05
        %v1068 = vadd.f32 %v1052, 1e-05
        %v1069 = vadd.f32 %v1053, 1e-05
        %v1070 = vadd.f32 %v1054, 1e-05
        %v1071 = vadd.f32 %v1055, 1e-05
        %v1072 = vadd.f32 %v1056, 1e-05
        %v1073 = vadd.f32 %v1057, 1e-05
        %v1074 = vadd.f32 %v1058, 1e-05
        %v1075 = vadd.f32 %v1059, 1e-05
        %v1076 = vadd.f32 %v1060, 1e-05
        %v1077 = vadd.f32 %v1061, 1e-05
        %v1078 = vadd.f32 %v1062, 1e-05
        %v1079 = vadd.f32 %v1063, 1e-05
        %v1080 = vadd.f32 %v1064, 1e-05
        %v1081 = vrsqrt.pop %v1065
        %v1082 = vrsqrt.pop %v1066
        %v1083 = vrsqrt.pop %v1067
        %v1084 = vrsqrt.pop %v1068
        %v1085 = vrsqrt.pop %v1069
        %v1086 = vrsqrt.pop %v1070
        %v1087 = vrsqrt.pop %v1071
        %v1088 = vrsqrt.pop %v1072
        %v1089 = vrsqrt.pop %v1073
        %v1090 = vrsqrt.pop %v1074
        %v1091 = vrsqrt.pop %v1075
        %v1092 = vrsqrt.pop %v1076
        %v1093 = vrsqrt.pop %v1077
        %v1094 = vrsqrt.pop %v1078
        %v1095 = vrsqrt.pop %v1079
        %v1096 = vrsqrt.pop %v1080
        %v1097 = vld [vmem:[%s234] sm:$0xff]
        %v1098 = vld [vmem:[%s234 + $0x8] sm:$0xff]
        %v1099 = vld [vmem:[%s234 + $0x10] sm:$0xff]
        %v1100 = vld [vmem:[%s234 + $0x18] sm:$0xff]
        %v1101 = vld [vmem:[%s234 + $0x20] sm:$0xff]
        %v1102 = vld [vmem:[%s234 + $0x28] sm:$0xff]
        %v1103 = vld [vmem:[%s234 + $0x30] sm:$0xff]
        %v1104 = vld [vmem:[%s234 + $0x38] sm:$0xff]
        %v1105 = vld [vmem:[%s234 + $0x40] sm:$0xff]
        %v1106 = vld [vmem:[%s234 + $0x48] sm:$0xff]
        %v1107 = vld [vmem:[%s234 + $0x50] sm:$0xff]
        %v1108 = vld [vmem:[%s234 + $0x58] sm:$0xff]
        %v1109 = vld [vmem:[%s234 + $0x60] sm:$0xff]
        %v1110 = vld [vmem:[%s234 + $0x68] sm:$0xff]
        %v1111 = vld [vmem:[%s234 + $0x70] sm:$0xff]
        %v1112 = vld [vmem:[%s234 + $0x78] sm:$0xff]
        %v1113 = vmul.f32 %v1097, %v1081
        %v1114 = vmul.f32 %v1098, %v1082
        %v1115 = vmul.f32 %v1099, %v1083
        %v1116 = vmul.f32 %v1100, %v1084
        %v1117 = vmul.f32 %v1101, %v1085
        %v1118 = vmul.f32 %v1102, %v1086
        %v1119 = vmul.f32 %v1103, %v1087
        %v1120 = vmul.f32 %v1104, %v1088
        %v1121 = vmul.f32 %v1105, %v1089
        %v1122 = vmul.f32 %v1106, %v1090
        %v1123 = vmul.f32 %v1107, %v1091
        %v1124 = vmul.f32 %v1108, %v1092
        %v1125 = vmul.f32 %v1109, %v1093
        %v1126 = vmul.f32 %v1110, %v1094
        %v1127 = vmul.f32 %v1111, %v1095
        %v1128 = vmul.f32 %v1112, %v1096
        %v1129 = vld [vmem:[%s240] sm:$0xff]
        %v1130 = vld [vmem:[%s240 + $0x8] sm:$0xff]
        %v1131 = vld [vmem:[%s240 + $0x10] sm:$0xff]
        %v1132 = vld [vmem:[%s240 + $0x18] sm:$0xff]
        %v1133 = vld [vmem:[%s240 + $0x20] sm:$0xff]
        %v1134 = vld [vmem:[%s240 + $0x28] sm:$0xff]
        %v1135 = vld [vmem:[%s240 + $0x30] sm:$0xff]
        %v1136 = vld [vmem:[%s240 + $0x38] sm:$0xff]
        %v1137 = vld [vmem:[%s240 + $0x40] sm:$0xff]
        %v1138 = vld [vmem:[%s240 + $0x48] sm:$0xff]
        %v1139 = vld [vmem:[%s240 + $0x50] sm:$0xff]
        %v1140 = vld [vmem:[%s240 + $0x58] sm:$0xff]
        %v1141 = vld [vmem:[%s240 + $0x60] sm:$0xff]
        %v1142 = vld [vmem:[%s240 + $0x68] sm:$0xff]
        %v1143 = vld [vmem:[%s240 + $0x70] sm:$0xff]
        %v1144 = vld [vmem:[%s240 + $0x78] sm:$0xff]
        %v1145 = vmul.f32 %v777, %v1113
        %v1146 = vmul.f32 %v778, %v1114
        %v1147 = vmul.f32 %v779, %v1115
        %v1148 = vmul.f32 %v780, %v1116
        %v1149 = vmul.f32 %v781, %v1117
        %v1150 = vmul.f32 %v782, %v1118
        %v1151 = vmul.f32 %v783, %v1119
        %v1152 = vmul.f32 %v784, %v1120
        %v1153 = vmul.f32 %v785, %v1121
        %v1154 = vmul.f32 %v786, %v1122
        %v1155 = vmul.f32 %v787, %v1123
        %v1156 = vmul.f32 %v788, %v1124
        %v1157 = vmul.f32 %v789, %v1125
        %v1158 = vmul.f32 %v790, %v1126
        %v1159 = vmul.f32 %v791, %v1127
        %v1160 = vmul.f32 %v792, %v1128
        %v1161 = vsub.f32 %v1129, %v1145
        %v1162 = vsub.f32 %v1130, %v1146
        %v1163 = vsub.f32 %v1131, %v1147
        %v1164 = vsub.f32 %v1132, %v1148
        %v1165 = vsub.f32 %v1133, %v1149
        %v1166 = vsub.f32 %v1134, %v1150
        %v1167 = vsub.f32 %v1135, %v1151
        %v1168 = vsub.f32 %v1136, %v1152
        %v1169 = vsub.f32 %v1137, %v1153
        %v1170 = vsub.f32 %v1138, %v1154
        %v1171 = vsub.f32 %v1139, %v1155
        %v1172 = vsub.f32 %v1140, %v1156
        %v1173 = vsub.f32 %v1141, %v1157
        %v1174 = vsub.f32 %v1142, %v1158
        %v1175 = vsub.f32 %v1143, %v1159
        %v1176 = vsub.f32 %v1144, %v1160
        %1178 = vset.pattern.permute.xlu0 0
        %1179 = vperm.xlu0 %1178, %v1113
        %v1180 = vpop.permute.xlu0 %1179
        %1183 = vset.pattern.permute.xlu0 0
        %1184 = vperm.xlu0 %1183, %v1114
        %v1185 = vpop.permute.xlu0 %1184
        %1188 = vset.pattern.permute.xlu0 0
        %1189 = vperm.xlu0 %1188, %v1115
        %v1190 = vpop.permute.xlu0 %1189
        %1193 = vset.pattern.permute.xlu0 0
        %1194 = vperm.xlu0 %1193, %v1116
        %v1195 = vpop.permute.xlu0 %1194
        %1198 = vset.pattern.permute.xlu0 0
        %1199 = vperm.xlu0 %1198, %v1117
        %v1200 = vpop.permute.xlu0 %1199
        %1203 = vset.pattern.permute.xlu0 0
        %1204 = vperm.xlu0 %1203, %v1118
        %v1205 = vpop.permute.xlu0 %1204
        %1208 = vset.pattern.permute.xlu0 0
        %1209 = vperm.xlu0 %1208, %v1119
        %v1210 = vpop.permute.xlu0 %1209
        %1213 = vset.pattern.permute.xlu0 0
        %1214 = vperm.xlu0 %1213, %v1120
        %v1215 = vpop.permute.xlu0 %1214
        %1218 = vset.pattern.permute.xlu0 0
        %1219 = vperm.xlu0 %1218, %v1121
        %v1220 = vpop.permute.xlu0 %1219
        %1223 = vset.pattern.permute.xlu0 0
        %1224 = vperm.xlu0 %1223, %v1122
        %v1225 = vpop.permute.xlu0 %1224
        %1228 = vset.pattern.permute.xlu0 0
        %1229 = vperm.xlu0 %1228, %v1123
        %v1230 = vpop.permute.xlu0 %1229
        %1233 = vset.pattern.permute.xlu0 0
        %1234 = vperm.xlu0 %1233, %v1124
        %v1235 = vpop.permute.xlu0 %1234
        %1238 = vset.pattern.permute.xlu0 0
        %1239 = vperm.xlu0 %1238, %v1125
        %v1240 = vpop.permute.xlu0 %1239
        %1243 = vset.pattern.permute.xlu0 0
        %1244 = vperm.xlu0 %1243, %v1126
        %v1245 = vpop.permute.xlu0 %1244
        %1248 = vset.pattern.permute.xlu0 0
        %1249 = vperm.xlu0 %1248, %v1127
        %v1250 = vpop.permute.xlu0 %1249
        %1253 = vset.pattern.permute.xlu0 0
        %1254 = vperm.xlu0 %1253, %v1128
        %v1255 = vpop.permute.xlu0 %1254
        %v1257 = vmul.f32 %v408, %v1180
        %v1258 = vmul.f32 %v410, %v1180
        %v1259 = vmul.f32 %v412, %v1185
        %v1260 = vmul.f32 %v414, %v1185
        %v1261 = vmul.f32 %v418, %v1190
        %v1262 = vmul.f32 %v420, %v1190
        %v1263 = vmul.f32 %v422, %v1195
        %v1264 = vmul.f32 %v424, %v1195
        %v1265 = vmul.f32 %v428, %v1200
        %v1266 = vmul.f32 %v430, %v1200
        %v1267 = vmul.f32 %v432, %v1205
        %v1268 = vmul.f32 %v434, %v1205
        %v1269 = vmul.f32 %v438, %v1210
        %v1270 = vmul.f32 %v440, %v1210
        %v1271 = vmul.f32 %v442, %v1215
        %v1272 = vmul.f32 %v444, %v1215
        %v1273 = vmul.f32 %v448, %v1220
        %v1274 = vmul.f32 %v450, %v1220
        %v1275 = vmul.f32 %v452, %v1225
        %v1276 = vmul.f32 %v454, %v1225
        %v1277 = vmul.f32 %v458, %v1230
        %v1278 = vmul.f32 %v460, %v1230
        %v1279 = vmul.f32 %v462, %v1235
        %v1280 = vmul.f32 %v464, %v1235
        %v1281 = vmul.f32 %v468, %v1240
        %v1282 = vmul.f32 %v470, %v1240
        %v1283 = vmul.f32 %v472, %v1245
        %v1284 = vmul.f32 %v474, %v1245
        %v1285 = vmul.f32 %v478, %v1250
        %v1286 = vmul.f32 %v480, %v1250
        %v1287 = vmul.f32 %v482, %v1255
        %v1288 = vmul.f32 %v484, %v1255
        %1290 = vset.pattern.permute.xlu0 0
        %1291 = vperm.xlu0 %1290, %v1161
        %v1292 = vpop.permute.xlu0 %1291
        %1295 = vset.pattern.permute.xlu0 0
        %1296 = vperm.xlu0 %1295, %v1162
        %v1297 = vpop.permute.xlu0 %1296
        %1300 = vset.pattern.permute.xlu0 0
        %1301 = vperm.xlu0 %1300, %v1163
        %v1302 = vpop.permute.xlu0 %1301
        %1305 = vset.pattern.permute.xlu0 0
        %1306 = vperm.xlu0 %1305, %v1164
        %v1307 = vpop.permute.xlu0 %1306
        %1310 = vset.pattern.permute.xlu0 0
        %1311 = vperm.xlu0 %1310, %v1165
        %v1312 = vpop.permute.xlu0 %1311
        %1315 = vset.pattern.permute.xlu0 0
        %1316 = vperm.xlu0 %1315, %v1166
        %v1317 = vpop.permute.xlu0 %1316
        %1320 = vset.pattern.permute.xlu0 0
        %1321 = vperm.xlu0 %1320, %v1167
        %v1322 = vpop.permute.xlu0 %1321
        %1325 = vset.pattern.permute.xlu0 0
        %1326 = vperm.xlu0 %1325, %v1168
        %v1327 = vpop.permute.xlu0 %1326
        %1330 = vset.pattern.permute.xlu0 0
        %1331 = vperm.xlu0 %1330, %v1169
        %v1332 = vpop.permute.xlu0 %1331
        %1335 = vset.pattern.permute.xlu0 0
        %1336 = vperm.xlu0 %1335, %v1170
        %v1337 = vpop.permute.xlu0 %1336
        %1340 = vset.pattern.permute.xlu0 0
        %1341 = vperm.xlu0 %1340, %v1171
        %v1342 = vpop.permute.xlu0 %1341
        %1345 = vset.pattern.permute.xlu0 0
        %1346 = vperm.xlu0 %1345, %v1172
        %v1347 = vpop.permute.xlu0 %1346
        %1350 = vset.pattern.permute.xlu0 0
        %1351 = vperm.xlu0 %1350, %v1173
        %v1352 = vpop.permute.xlu0 %1351
        %1355 = vset.pattern.permute.xlu0 0
        %1356 = vperm.xlu0 %1355, %v1174
        %v1357 = vpop.permute.xlu0 %1356
        %1360 = vset.pattern.permute.xlu0 0
        %1361 = vperm.xlu0 %1360, %v1175
        %v1362 = vpop.permute.xlu0 %1361
        %1365 = vset.pattern.permute.xlu0 0
        %1366 = vperm.xlu0 %1365, %v1176
        %v1367 = vpop.permute.xlu0 %1366
        %v1369 = vadd.f32 %v1257, %v1292
        %v1370 = vadd.f32 %v1258, %v1292
        %v1371 = vadd.f32 %v1259, %v1297
        %v1372 = vadd.f32 %v1260, %v1297
        %v1373 = vadd.f32 %v1261, %v1302
        %v1374 = vadd.f32 %v1262, %v1302
        %v1375 = vadd.f32 %v1263, %v1307
        %v1376 = vadd.f32 %v1264, %v1307
        %v1377 = vadd.f32 %v1265, %v1312
        %v1378 = vadd.f32 %v1266, %v1312
        %v1379 = vadd.f32 %v1267, %v1317
        %v1380 = vadd.f32 %v1268, %v1317
        %v1381 = vadd.f32 %v1269, %v1322
        %v1382 = vadd.f32 %v1270, %v1322
        %v1383 = vadd.f32 %v1271, %v1327
        %v1384 = vadd.f32 %v1272, %v1327
        %v1385 = vadd.f32 %v1273, %v1332
        %v1386 = vadd.f32 %v1274, %v1332
        %v1387 = vadd.f32 %v1275, %v1337
        %v1388 = vadd.f32 %v1276, %v1337
        %v1389 = vadd.f32 %v1277, %v1342
        %v1390 = vadd.f32 %v1278, %v1342
        %v1391 = vadd.f32 %v1279, %v1347
        %v1392 = vadd.f32 %v1280, %v1347
        %v1393 = vadd.f32 %v1281, %v1352
        %v1394 = vadd.f32 %v1282, %v1352
        %v1395 = vadd.f32 %v1283, %v1357
        %v1396 = vadd.f32 %v1284, %v1357
        %v1397 = vadd.f32 %v1285, %v1362
        %v1398 = vadd.f32 %v1286, %v1362
        %v1399 = vadd.f32 %v1287, %v1367
        %v1400 = vadd.f32 %v1288, %v1367
        %1401 = vst [vmem:[%s223] sm:$0xff] %v1369
        %1402 = vst [vmem:[%s223 + $0x8] sm:$0xff] %v1370
        %1403 = vst [vmem:[%s223 + $0x10] sm:$0xff] %v1371
        %1404 = vst [vmem:[%s223 + $0x18] sm:$0xff] %v1372
        %1405 = vst [vmem:[%s223 + $0x20] sm:$0xff] %v1373
        %1406 = vst [vmem:[%s223 + $0x28] sm:$0xff] %v1374
        %1407 = vst [vmem:[%s223 + $0x30] sm:$0xff] %v1375
        %1408 = vst [vmem:[%s223 + $0x38] sm:$0xff] %v1376
        %1409 = vst [vmem:[%s223 + $0x40] sm:$0xff] %v1377
        %1410 = vst [vmem:[%s223 + $0x48] sm:$0xff] %v1378
        %1411 = vst [vmem:[%s223 + $0x50] sm:$0xff] %v1379
        %1412 = vst [vmem:[%s223 + $0x58] sm:$0xff] %v1380
        %1413 = vst [vmem:[%s223 + $0x60] sm:$0xff] %v1381
        %1414 = vst [vmem:[%s223 + $0x68] sm:$0xff] %v1382
        %1415 = vst [vmem:[%s223 + $0x70] sm:$0xff] %v1383
        %1416 = vst [vmem:[%s223 + $0x78] sm:$0xff] %v1384
        %1417 = vst [vmem:[%s223 + $0x80] sm:$0xff] %v1385
        %1418 = vst [vmem:[%s223 + $0x88] sm:$0xff] %v1386
        %1419 = vst [vmem:[%s223 + $0x90] sm:$0xff] %v1387
        %1420 = vst [vmem:[%s223 + $0x98] sm:$0xff] %v1388
        %1421 = vst [vmem:[%s223 + $0xa0] sm:$0xff] %v1389
        %1422 = vst [vmem:[%s223 + $0xa8] sm:$0xff] %v1390
        %1423 = vst [vmem:[%s223 + $0xb0] sm:$0xff] %v1391
        %1424 = vst [vmem:[%s223 + $0xb8] sm:$0xff] %v1392
        %1425 = vst [vmem:[%s223 + $0xc0] sm:$0xff] %v1393
        %1426 = vst [vmem:[%s223 + $0xc8] sm:$0xff] %v1394
        %1427 = vst [vmem:[%s223 + $0xd0] sm:$0xff] %v1395
        %1428 = vst [vmem:[%s223 + $0xd8] sm:$0xff] %v1396
        %1429 = vst [vmem:[%s223 + $0xe0] sm:$0xff] %v1397
        %1430 = vst [vmem:[%s223 + $0xe8] sm:$0xff] %v1398
        %1431 = vst [vmem:[%s223 + $0xf0] sm:$0xff] %v1399
        %1432 = vst [vmem:[%s223 + $0xf8] sm:$0xff] %v1400
        %v1433 = vmul.f32 %v634, %v1180
        %v1434 = vmul.f32 %v636, %v1180
        %v1435 = vmul.f32 %v638, %v1185
        %v1436 = vmul.f32 %v640, %v1185
        %v1437 = vmul.f32 %v644, %v1190
        %v1438 = vmul.f32 %v646, %v1190
        %v1439 = vmul.f32 %v648, %v1195
        %v1440 = vmul.f32 %v650, %v1195
        %v1441 = vmul.f32 %v654, %v1200
        %v1442 = vmul.f32 %v656, %v1200
        %v1443 = vmul.f32 %v658, %v1205
        %v1444 = vmul.f32 %v660, %v1205
        %v1445 = vmul.f32 %v664, %v1210
        %v1446 = vmul.f32 %v666, %v1210
        %v1447 = vmul.f32 %v668, %v1215
        %v1448 = vmul.f32 %v670, %v1215
        %v1449 = vmul.f32 %v674, %v1220
        %v1450 = vmul.f32 %v676, %v1220
        %v1451 = vmul.f32 %v678, %v1225
        %v1452 = vmul.f32 %v680, %v1225
        %v1453 = vmul.f32 %v684, %v1230
        %v1454 = vmul.f32 %v686, %v1230
        %v1455 = vmul.f32 %v688, %v1235
        %v1456 = vmul.f32 %v690, %v1235
        %v1457 = vmul.f32 %v694, %v1240
        %v1458 = vmul.f32 %v696, %v1240
        %v1459 = vmul.f32 %v698, %v1245
        %v1460 = vmul.f32 %v700, %v1245
        %v1461 = vmul.f32 %v704, %v1250
        %v1462 = vmul.f32 %v706, %v1250
        %v1463 = vmul.f32 %v708, %v1255
        %v1464 = vmul.f32 %v710, %v1255
        %v1465 = vadd.f32 %v1433, %v1292
        %v1466 = vadd.f32 %v1434, %v1292
        %v1467 = vadd.f32 %v1435, %v1297
        %v1468 = vadd.f32 %v1436, %v1297
        %v1469 = vadd.f32 %v1437, %v1302
        %v1470 = vadd.f32 %v1438, %v1302
        %v1471 = vadd.f32 %v1439, %v1307
        %v1472 = vadd.f32 %v1440, %v1307
        %v1473 = vadd.f32 %v1441, %v1312
        %v1474 = vadd.f32 %v1442, %v1312
        %v1475 = vadd.f32 %v1443, %v1317
        %v1476 = vadd.f32 %v1444, %v1317
        %v1477 = vadd.f32 %v1445, %v1322
        %v1478 = vadd.f32 %v1446, %v1322
        %v1479 = vadd.f32 %v1447, %v1327
        %v1480 = vadd.f32 %v1448, %v1327
        %v1481 = vadd.f32 %v1449, %v1332
        %v1482 = vadd.f32 %v1450, %v1332
        %v1483 = vadd.f32 %v1451, %v1337
        %v1484 = vadd.f32 %v1452, %v1337
        %v1485 = vadd.f32 %v1453, %v1342
        %v1486 = vadd.f32 %v1454, %v1342
        %v1487 = vadd.f32 %v1455, %v1347
        %v1488 = vadd.f32 %v1456, %v1347
        %v1489 = vadd.f32 %v1457, %v1352
        %v1490 = vadd.f32 %v1458, %v1352
        %v1491 = vadd.f32 %v1459, %v1357
        %v1492 = vadd.f32 %v1460, %v1357
        %v1493 = vadd.f32 %v1461, %v1362
        %v1494 = vadd.f32 %v1462, %v1362
        %v1495 = vadd.f32 %v1463, %v1367
        %v1496 = vadd.f32 %v1464, %v1367
        %s1497 = scalar_lea.vmem %s223, 256 [#allocation2]
        %1498 = vst [vmem:[%s1497] sm:$0xff] %v1465
        %1499 = vst [vmem:[%s1497 + $0x8] sm:$0xff] %v1466
        %1500 = vst [vmem:[%s1497 + $0x10] sm:$0xff] %v1467
        %1501 = vst [vmem:[%s1497 + $0x18] sm:$0xff] %v1468
        %1502 = vst [vmem:[%s1497 + $0x20] sm:$0xff] %v1469
        %1503 = vst [vmem:[%s1497 + $0x28] sm:$0xff] %v1470
        %1504 = vst [vmem:[%s1497 + $0x30] sm:$0xff] %v1471
        %1505 = vst [vmem:[%s1497 + $0x38] sm:$0xff] %v1472
        %1506 = vst [vmem:[%s1497 + $0x40] sm:$0xff] %v1473
        %1507 = vst [vmem:[%s1497 + $0x48] sm:$0xff] %v1474
        %1508 = vst [vmem:[%s1497 + $0x50] sm:$0xff] %v1475
        %1509 = vst [vmem:[%s1497 + $0x58] sm:$0xff] %v1476
        %1510 = vst [vmem:[%s1497 + $0x60] sm:$0xff] %v1477
        %1511 = vst [vmem:[%s1497 + $0x68] sm:$0xff] %v1478
        %1512 = vst [vmem:[%s1497 + $0x70] sm:$0xff] %v1479
        %1513 = vst [vmem:[%s1497 + $0x78] sm:$0xff] %v1480
        %1514 = vst [vmem:[%s1497 + $0x80] sm:$0xff] %v1481
        %1515 = vst [vmem:[%s1497 + $0x88] sm:$0xff] %v1482
        %1516 = vst [vmem:[%s1497 + $0x90] sm:$0xff] %v1483
        %1517 = vst [vmem:[%s1497 + $0x98] sm:$0xff] %v1484
        %1518 = vst [vmem:[%s1497 + $0xa0] sm:$0xff] %v1485
        %1519 = vst [vmem:[%s1497 + $0xa8] sm:$0xff] %v1486
        %1520 = vst [vmem:[%s1497 + $0xb0] sm:$0xff] %v1487
        %1521 = vst [vmem:[%s1497 + $0xb8] sm:$0xff] %v1488
        %1522 = vst [vmem:[%s1497 + $0xc0] sm:$0xff] %v1489
        %1523 = vst [vmem:[%s1497 + $0xc8] sm:$0xff] %v1490
        %1524 = vst [vmem:[%s1497 + $0xd0] sm:$0xff] %v1491
        %1525 = vst [vmem:[%s1497 + $0xd8] sm:$0xff] %v1492
        %1526 = vst [vmem:[%s1497 + $0xe0] sm:$0xff] %v1493
        %1527 = vst [vmem:[%s1497 + $0xe8] sm:$0xff] %v1494
        %1528 = vst [vmem:[%s1497 + $0xf0] sm:$0xff] %v1495
        %1529 = vst [vmem:[%s1497 + $0xf8] sm:$0xff] %v1496
        %s1530 = sand.u32 %s125, 1
        %s1531 = scalar_lea.sflag [#allocation3], %s1530
        %s1532 = sand.u32 %s125, 1
        %s1533 = smul.addr %s1532, 512
        %s1534 = scalar_lea.vmem [#allocation2], %s1533
        // Predicated region
        $region37: #{tpu_custom_call.1} parent=35 // pred_check
          %p1535 = pneg %p135
        $region38: #{tpu_custom_call.1} parent=35 // pred_check_branch
          %1537 = sbr.rel (%p1535) target = $region40
        $region39: #{tpu_custom_call.1} parent=35 // pred_region
          #allocation5 [shape = 'u32[6]{0}', space=smem, size = 0x18, scoped, tag = 'DMA stride descriptor']
          %s1538 = smul.u32 16, %s18
          %s1540 = ssub.s32 8192, 8192
          %1541 = vsyncadd %s1531, %s1540
          %s1542 = smul.addr %s1538, 2
          %s1543 = smul.addr %s1542, 128
          %s1544 = scalar_lea.hbm %s4, %s1543
          %s1546 = sshll.u32 1, 14
          %s1547 = sxor.u32 4294967295, %s1546
          %s1550 = sshll.u32 7, 18
          %s1551 = sxor.u32 4294967295, %s1550
          %s1552 = sand.u32 0, %s1551
          %s1554 = sor.u32 %s1552, 0
          %s1555 = sshll.u32 %s1534, 4
          %s1556 = int_to_ptr.vmem [resolvable:$true] %s1555
          %1562 = sst [smem:[#allocation5]] 4096
          %s1563 = scalar_lea.smem [#allocation5], 1
          %1564 = sst [smem:[%s1563]] 12288
          %s1565 = scalar_lea.smem [#allocation5], 2
          %1566 = sst [smem:[%s1565]] 16
          %s1567 = scalar_lea.smem [#allocation5], 3
          %1568 = sst [smem:[%s1567]] 256
          %s1569 = scalar_lea.smem [#allocation5], 4
          %1570 = sst [smem:[%s1569]] 256
          %s1571 = scalar_lea.smem [#allocation5], 5
          %1572 = sst [smem:[%s1571]] 16
          %1574 = dma.general %s1556, 8192, %s1544, %s1531, 131072, [#allocation5], %s1554, 0
        $region40: #{tpu_custom_call.1} parent=35 // pred_fallthru
          _
      $region36: #{tpu_custom_call.1} parent=5 // pred_fallthru
        _
      %p1575 = scmp.le.s32.totalorder 2, %s13
      // Predicated region
      $region41: #{tpu_custom_call.1} parent=5 // pred_check
        %p1576 = pneg %p1575
      $region42: #{tpu_custom_call.1} parent=5 // pred_check_branch
        %1578 = sbr.rel (%p1576) target = $region44
      $region43: #{tpu_custom_call.1} parent=5 // pred_region
        %s1579 = ssub.s32 %s13, 2
        // Predicated region
        $region45: #{tpu_custom_call.1} parent=43 // pred_check
          %p1580 = pneg %p141
        $region46: #{tpu_custom_call.1} parent=43 // pred_check_branch
          %1582 = sbr.rel (%p1580) target = $region48
        $region47: #{tpu_custom_call.1} parent=43 // pred_region
          %s1583 = sand.u32 %s126, 1
          %s1584 = scalar_lea.sflag [#allocation3], %s1583
          %s1585 = sand.u32 %s126, 1
          %s1586 = smul.addr %s1585, 512
          %s1587 = scalar_lea.vmem [#allocation2], %s1586
          %1588 = dma.done %s1584, 8192
        $region48: #{tpu_custom_call.1} parent=43 // pred_fallthru
          _
      $region44: #{tpu_custom_call.1} parent=5 // pred_fallthru
        _
    $region6: #{tpu_custom_call.1} parent=1 // loop_footer
      %s17 = sadd.s32 1, %s13
    $region7: #{tpu_custom_call.1} parent=1 // loop_footer_branch
      %12 = sbr.rel target = $region3
    $region8: #{tpu_custom_call.1} parent=1 // loop_exit
      _
    %1589 = vsyncpa [#allocation3], 1
    %s1590 = scalar_lea.sflag [#allocation3], 1
    %1591 = vsyncpa %s1590, 1

</llo_original>
